<compile_context>
chip_gen: v5e
topology: v5e:2x2
jax: 0.10.0
libtpu: 0.0.40
codegen_flags: <defaults>
</compile_context>

<pallas_src>
import functools

import jax
import jax.numpy as jnp
import numpy as np
from jax import lax
from jax.experimental import pallas as pl
from jax.experimental.pallas import tpu as pltpu


def _fused_conv_bn_kernel(mask_ref, x_ref, w_ref, g_ref, b_ref, o_ref,
                          *scratch, shifts, inv_count, eps, keep_acts):
    """Two-pass fused conv + BatchNorm (training-mode batch stats).

    Grid = (2, num_batch_tiles), both axes sequential ("arbitrary"):
      p == 0 : conv (single K-stacked GEMM per image) -> per-channel sum / sum-of-sq
               accumulated in VMEM scratch; raw activations optionally persisted.
      p == 1 : finalize scale/shift once, then write (y * scale + shift) lane-dense
               over the flattened spatial axis.
    """
    if keep_acts:
        acts_ref, xstk_ref, ssum_ref, ssq_ref, scale_ref, shift_ref = scratch
    else:
        xstk_ref, ssum_ref, ssq_ref, scale_ref, shift_ref = scratch

    p = pl.program_id(0)          # 0: stats pass, 1: apply pass
    i = pl.program_id(1)          # batch-tile index

    bb, oc, lv = o_ref.shape
    _, c, _ = x_ref.shape
    kt = len(shifts)
    cs = xstk_ref.shape[0] // kt  # sublane stride of one tap inside the K-stack

    def conv_image(b):
        """One image: build the (kt*cs, lv) K-stacked operand, do ONE (oc,K)@(K,lv) GEMM."""
        xv = x_ref[b]                                      # (c, L) slab, loaded once
        for t, sh in enumerate(shifts):                    # static: kt shifted windows
            xstk_ref[pl.ds(t * cs, c), :] = xv[:, sh:sh + lv]
        return jnp.dot(w_ref[...], xstk_ref[...],
                       preferred_element_type=jnp.float32)  # (oc, lv)

    # ------------------- pass 0: conv + per-channel statistics -------------------
    @pl.when(p == 0)
    def _stats_pass():
        @pl.when(i == 0)
        def _init():
            ssum_ref[...] = jnp.zeros_like(ssum_ref)
            ssq_ref[...] = jnp.zeros_like(ssq_ref)
            # Rows [c, cs) of every tap stay zero forever (only rows < c are ever
            # rewritten), so the zero-padded contraction is exact without padding x.
            xstk_ref[...] = jnp.zeros_like(xstk_ref)

        mask = mask_ref[...]                               # (1, lv): 1.0 at real outputs

        def step(b, carry):
            s_sum, s_sq = carry
            y = conv_image(b)
            if keep_acts:
                acts_ref[i * bb + b] = y                   # persist raw activations
            ym = y * mask                                  # zero the garbage columns
            return (s_sum + jnp.sum(ym, axis=1, keepdims=True),
                    s_sq + jnp.sum(ym * y, axis=1, keepdims=True))

        init = (jnp.zeros((oc, 1), jnp.float32), jnp.zeros((oc, 1), jnp.float32))
        if bb <= 8:                                        # short fixed loop: static unroll
            acc = init
            for b in range(bb):
                acc = step(b, acc)
        else:                                              # big tile: bounded live ranges
            acc = lax.fori_loop(0, bb, step, init, unroll=2)

        # Local accumulation above -> a single scratch read-modify-write per grid step.
        ssum_ref[...] += acc[0]
        ssq_ref[...] += acc[1]

    # ------------------- pass 1: finalize BN, normalize, write -------------------
    @pl.when(p == 1)
    def _apply_pass():
        @pl.when(i == 0)
        def _finalize_stats():
            mean = ssum_ref[...] * inv_count
            var = ssq_ref[...] * inv_count - mean * mean   # biased variance (training BN)
            sc = g_ref[...] * lax.rsqrt(var + eps)
            scale_ref[...] = sc
            shift_ref[...] = b_ref[...] - mean * sc

        # Hoist the (oc, lv) broadcasts out of the per-image loop (no CSE of broadcasts).
        scale_b = jnp.broadcast_to(scale_ref[...], (oc, lv))
        shift_b = jnp.broadcast_to(shift_ref[...], (oc, lv))

        def step(b, carry):
            y = acts_ref[i * bb + b] if keep_acts else conv_image(b)
            o_ref[b] = y * scale_b + shift_b
            return carry

        if bb <= 8:
            for b in range(bb):
                step(b, 0)
        else:
            lax.fori_loop(0, bb, step, 0, unroll=2)


def _tpu_budgets():
    """(tile_budget, vmem_limit_cap, acts_budget) per TPU generation."""
    try:
        cap = pltpu.get_tpu_info().vmem_capacity_bytes
    except Exception:
        cap = 64 << 20
    if cap >= (96 << 20):        # v5e / v6e: 128 MiB physical VMEM
        return 48 << 20, 96 << 20, 32 << 20
    # v7x: 64 MiB per TensorCore -> leave headroom for compiler-internal buffers.
    return 20 << 20, 48 << 20, 16 << 20


def _pick_batch_tile(n, bytes_per_image, budget_bytes, max_unroll=32):
    """Largest divisor of n whose double-buffered in+out tiles fit the budget."""
    bb = max(1, min(n, max_unroll, budget_bytes // max(2 * bytes_per_image, 1)))
    while n % bb:
        bb -= 1
    return bb


@functools.partial(jax.jit,
                   static_argnames=("stride", "padding", "dilation", "eps"))
def basic_conv2d(x, weight, gamma, beta, *, stride=1, padding=0, dilation=1,
                 eps=1e-5):
    """x: [N, C, H, W]; weight: [OC, C, KH, KW] (PyTorch OIHW, bias=False). Returns NCHW."""
    N, C, H, W = x.shape
    OC, _, KH, KW = weight.shape
    HP, WP = H + 2 * padding, W + 2 * padding
    OH = (HP - dilation * (KH - 1) - 1) // stride + 1
    OW = (WP - dilation * (KW - 1) - 1) // stride + 1
    L = HP * WP
    max_shift = dilation * (KH - 1) * WP + dilation * (KW - 1)
    Lv = L - max_shift                       # flat-spatial columns the kernel computes
    Kt = KH * KW
    Cs = ((C + 7) // 8) * 8                  # per-tap sublane stride in the K-stack

    # ---- cheap host-side layout plumbing (no im2col blow-up, no x channel pad) ----
    x_flat = jnp.pad(x.astype(jnp.float32),
                     ((0, 0), (0, 0), (padding, padding), (padding, padding))
                     ).reshape(N, C, L)                                 # (N, C, HP*WP)
    w_stk = jnp.pad(jnp.transpose(weight.astype(jnp.float32),
                                  (0, 2, 3, 1)).reshape(OC, Kt, C),
                    ((0, 0), (0, 0), (0, Cs - C))).reshape(OC, Kt * Cs)  # (OC, Kt*Cs)
    gamma2 = gamma.reshape(OC, 1).astype(jnp.float32)
    beta2 = beta.reshape(OC, 1).astype(jnp.float32)

    # Flat-spatial positions that are real conv outputs (stride/dilation aware).
    mask_np = np.zeros((1, Lv), np.float32)
    pos = (np.arange(OH) * stride)[:, None] * WP + (np.arange(OW) * stride)[None, :]
    mask_np[0, pos.reshape(-1)] = 1.0
    mask = jnp.asarray(mask_np)

    shifts = tuple(ih * dilation * WP + iw * dilation
                   for ih in range(KH) for iw in range(KW))

    tile_budget, limit_cap, acts_budget = _tpu_budgets()
    bytes_per_image = 4 * (C * L + OC * Lv)
    bb = _pick_batch_tile(N, bytes_per_image, tile_budget)
    num_tiles = N // bb

    acts_bytes = 4 * N * OC * Lv
    keep_acts = acts_bytes <= acts_budget    # hold raw activations in VMEM across passes

    fixed_bytes = 4 * (Kt * Cs * Lv + Lv + OC * Kt * Cs + 6 * OC)
    vmem_limit = int(min(limit_cap,
                         max(32 << 20,
                             2 * bb * bytes_per_image + fixed_bytes
                             + (acts_bytes if keep_acts else 0) + (8 << 20))))

    kernel = functools.partial(
        _fused_conv_bn_kernel,
        shifts=shifts,
        inv_count=1.0 / float(N * OH * OW),
        eps=float(eps),
        keep_acts=keep_acts)

    if keep_acts:
        # Pass 1 never touches x: pin its block to the last tile so no DMA re-fetch.
        x_index_map = lambda p, i: ((1 - p) * i + p * (num_tiles - 1), 0, 0)
    else:
        x_index_map = lambda p, i: (i, 0, 0)

    scratch = []
    if keep_acts:
        scratch.append(pltpu.VMEM((N, OC, Lv), jnp.float32))        # persisted activations
    scratch.append(pltpu.VMEM((Kt * Cs, Lv), jnp.float32))          # K-stacked operand
    scratch += [pltpu.VMEM((OC, 1), jnp.float32) for _ in range(4)]  # ssum, ssq, scale, shift

    out_full = pl.pallas_call(
        kernel,
        out_shape=jax.ShapeDtypeStruct((N, OC, Lv), jnp.float32),
        grid_spec=pltpu.PrefetchScalarGridSpec(
            num_scalar_prefetch=0,
            grid=(2, num_tiles),
            in_specs=[
                pl.BlockSpec((1, Lv), lambda p, i: (0, 0)),                # valid mask
                pl.BlockSpec((bb, C, L), x_index_map),                     # input tile
                pl.BlockSpec((OC, Kt * Cs), lambda p, i: (0, 0)),          # stacked weights
                pl.BlockSpec((OC, 1), lambda p, i: (0, 0)),                # gamma
                pl.BlockSpec((OC, 1), lambda p, i: (0, 0)),                # beta
            ],
            # p*i keeps the (unwritten) output block resident through the stats pass,
            # so nothing is flushed to HBM until real data is written in pass 1.
            out_specs=pl.BlockSpec((bb, OC, Lv), lambda p, i: (p * i, 0, 0)),
            scratch_shapes=scratch,
        ),
        compiler_params=pltpu.CompilerParams(
            dimension_semantics=("arbitrary", "arbitrary"),
            vmem_limit_bytes=vmem_limit),
    )(mask, x_flat, w_stk, gamma2, beta2)

    # Un-flatten: real outputs live at flat position oh*stride*WP + ow*stride.
    y_full = jnp.pad(out_full, ((0, 0), (0, 0), (0, L - Lv))).reshape(N, OC, HP, WP)
    return y_full[:, :,
                  :(OH - 1) * stride + 1:stride,
                  :(OW - 1) * stride + 1:stride]


def _reference(x, weight, gamma, beta, *, stride, padding, dilation, eps=1e-5):
    y = jax.lax.conv_general_dilated(
        x, weight, window_strides=(stride, stride),
        padding=[(padding, padding), (padding, padding)],
        rhs_dilation=(dilation, dilation),
        dimension_numbers=("NCHW", "OIHW", "NCHW"))
    m = y.mean(axis=(0, 2, 3), keepdims=True)
    v = y.var(axis=(0, 2, 3), keepdims=True)   # biased variance (training-mode BN)
    g = gamma.reshape(1, -1, 1, 1)
    b = beta.reshape(1, -1, 1, 1)
    return (y - m) / jnp.sqrt(v + eps) * g + b


if __name__ == "__main__":
    # Module config: BasicConv2d(in_planes=4, out_planes=8, kernel_size=3, padding=1)
    N, C, H, W = 2, 4, 16, 16
    OC, KH, KW = 8, 3, 3
    stride, padding, dilation = 1, 1, 1

    key = jax.random.PRNGKey(0)
    kx, kw, kg, kb = jax.random.split(key, 4)
    x = jax.random.normal(kx, (N, C, H, W), dtype=jnp.float32)
    weight = jax.random.normal(kw, (OC, C, KH, KW), dtype=jnp.float32) * 0.1
    gamma = 1.0 + 0.1 * jax.random.normal(kg, (OC,), dtype=jnp.float32)
    beta = 0.1 * jax.random.normal(kb, (OC,), dtype=jnp.float32)

    out = basic_conv2d(x, weight, gamma, beta,
                       stride=stride, padding=padding, dilation=dilation)
    out = jax.block_until_ready(out)

    ref = _reference(x, weight, gamma, beta,
                     stride=stride, padding=padding, dilation=dilation)
    np.testing.assert_allclose(np.asarray(out), np.asarray(ref), rtol=1e-3, atol=2e-3)

    print("KERNEL_OK")
</pallas_src>

<mosaic_0001>
module attributes {stable_mosaic.version = 11 : i64} {
  func.func @_fused_conv_bn_kernel(%arg0: i32, %arg1: i32, %arg2: memref<1x286xf32, #tpu.memory_space<vmem>>, %arg3: memref<2x4x324xf32, #tpu.memory_space<vmem>>, %arg4: memref<8x72xf32, #tpu.memory_space<vmem>>, %arg5: memref<8x1xf32, #tpu.memory_space<vmem>>, %arg6: memref<8x1xf32, #tpu.memory_space<vmem>>, %arg7: memref<2x8x286xf32, #tpu.memory_space<vmem>>, %arg8: memref<2x8x286xf32, #tpu.memory_space<vmem>>, %arg9: memref<72x286xf32, #tpu.memory_space<vmem>>, %arg10: memref<8x1xf32, #tpu.memory_space<vmem>>, %arg11: memref<8x1xf32, #tpu.memory_space<vmem>>, %arg12: memref<8x1xf32, #tpu.memory_space<vmem>>, %arg13: memref<8x1xf32, #tpu.memory_space<vmem>>) attributes {dimension_semantics = [#tpu.dimension_semantics<arbitrary>, #tpu.dimension_semantics<arbitrary>], iteration_bounds = array<i64: 2, 1>, scalar_prefetch = 0 : i64, scratch_operands = 6 : i64, tpu.core_type = #tpu.core_type<tc>, window_params = [{pipeline_mode = #tpu.pipeline_mode<synchronous>, transform_indices = @transform_0, window_bounds = array<i64: 1, 286>}, {transform_indices = @transform_1, window_bounds = array<i64: 2, 4, 324>}, {pipeline_mode = #tpu.pipeline_mode<synchronous>, transform_indices = @transform_2, window_bounds = array<i64: 8, 72>}, {pipeline_mode = #tpu.pipeline_mode<synchronous>, transform_indices = @transform_3, window_bounds = array<i64: 8, 1>}, {pipeline_mode = #tpu.pipeline_mode<synchronous>, transform_indices = @transform_4, window_bounds = array<i64: 8, 1>}, {transform_indices = @transform_5, window_bounds = array<i64: 2, 8, 286>}]} {
    %c0_i32 = arith.constant 0 : i32
    %0 = arith.cmpi eq, %arg0, %c0_i32 : i32
    %1 = arith.extui %0 : i1 to i32
    %c0_i32_0 = arith.constant 0 : i32
    %2 = arith.cmpi ne, %1, %c0_i32_0 : i32
    scf.if %2 {
      %c0_i32_2 = arith.constant 0 : i32
      %6 = arith.cmpi eq, %arg1, %c0_i32_2 : i32
      %7 = arith.extui %6 : i1 to i32
      %c0_i32_3 = arith.constant 0 : i32
      %8 = arith.cmpi ne, %7, %c0_i32_3 : i32
      scf.if %8 {
        %cst_68 = arith.constant 0.000000e+00 : f32
        %94 = vector.broadcast %cst_68 : f32 to vector<8x1xf32>
        %c0_69 = arith.constant 0 : index
        %c0_70 = arith.constant 0 : index
        %95 = vector.load %arg10[%c0_69, %c0_70] : memref<8x1xf32, #tpu.memory_space<vmem>>, vector<8x1xf32>
        tpu.vector_store %arg10[%c0_69, %c0_70], %94 {strides = array<i32>} : memref<8x1xf32, #tpu.memory_space<vmem>>, vector<8x1xf32>,
        %cst_71 = arith.constant 0.000000e+00 : f32
        %96 = vector.broadcast %cst_71 : f32 to vector<8x1xf32>
        %c0_72 = arith.constant 0 : index
        %c0_73 = arith.constant 0 : index
        %97 = vector.load %arg11[%c0_72, %c0_73] : memref<8x1xf32, #tpu.memory_space<vmem>>, vector<8x1xf32>
        tpu.vector_store %arg11[%c0_72, %c0_73], %96 {strides = array<i32>} : memref<8x1xf32, #tpu.memory_space<vmem>>, vector<8x1xf32>,
        %cst_74 = arith.constant 0.000000e+00 : f32
        %98 = vector.broadcast %cst_74 : f32 to vector<72x286xf32>
        %c0_75 = arith.constant 0 : index
        %c0_76 = arith.constant 0 : index
        %99 = vector.load %arg9[%c0_75, %c0_76] : memref<72x286xf32, #tpu.memory_space<vmem>>, vector<72x286xf32>
        tpu.vector_store %arg9[%c0_75, %c0_76], %98 {strides = array<i32>} : memref<72x286xf32, #tpu.memory_space<vmem>>, vector<72x286xf32>,
      } else {
      }
      %c0 = arith.constant 0 : index
      %c0_4 = arith.constant 0 : index
      %9 = vector.load %arg2[%c0, %c0_4] : memref<1x286xf32, #tpu.memory_space<vmem>>, vector<1x286xf32>
      %cst = arith.constant 0.000000e+00 : f32
      %10 = vector.broadcast %cst : f32 to vector<8x1xf32>
      %cst_5 = arith.constant 0.000000e+00 : f32
      %11 = vector.broadcast %cst_5 : f32 to vector<8x1xf32>
      %c0_6 = arith.constant 0 : index
      %c0_7 = arith.constant 0 : index
      %c0_8 = arith.constant 0 : index
      %12 = vector.load %arg3[%c0_6, %c0_7, %c0_8] : memref<2x4x324xf32, #tpu.memory_space<vmem>>, vector<1x4x324xf32>
      %13 = vector.shape_cast %12 : vector<1x4x324xf32> to vector<4x324xf32>
      %14 = vector.extract_strided_slice %13 {offsets = [0, 0], sizes = [4, 286], strides = [1, 1]} : vector<4x324xf32> to vector<4x286xf32>
      %c0_9 = arith.constant 0 : index
      %c0_10 = arith.constant 0 : index
      %15 = vector.load %arg9[%c0_9, %c0_10] : memref<72x286xf32, #tpu.memory_space<vmem>>, vector<4x286xf32>
      tpu.vector_store %arg9[%c0_9, %c0_10], %14 {strides = array<i32>} : memref<72x286xf32, #tpu.memory_space<vmem>>, vector<4x286xf32>,
      %16 = vector.extract_strided_slice %13 {offsets = [0, 1], sizes = [4, 286], strides = [1, 1]} : vector<4x324xf32> to vector<4x286xf32>
      %c8 = arith.constant 8 : index
      %c0_11 = arith.constant 0 : index
      %17 = vector.load %arg9[%c8, %c0_11] : memref<72x286xf32, #tpu.memory_space<vmem>>, vector<4x286xf32>
      tpu.vector_store %arg9[%c8, %c0_11], %16 {strides = array<i32>} : memref<72x286xf32, #tpu.memory_space<vmem>>, vector<4x286xf32>,
      %18 = vector.extract_strided_slice %13 {offsets = [0, 2], sizes = [4, 286], strides = [1, 1]} : vector<4x324xf32> to vector<4x286xf32>
      %c16 = arith.constant 16 : index
      %c0_12 = arith.constant 0 : index
      %19 = vector.load %arg9[%c16, %c0_12] : memref<72x286xf32, #tpu.memory_space<vmem>>, vector<4x286xf32>
      tpu.vector_store %arg9[%c16, %c0_12], %18 {strides = array<i32>} : memref<72x286xf32, #tpu.memory_space<vmem>>, vector<4x286xf32>,
      %20 = vector.extract_strided_slice %13 {offsets = [0, 18], sizes = [4, 286], strides = [1, 1]} : vector<4x324xf32> to vector<4x286xf32>
      %c24 = arith.constant 24 : index
      %c0_13 = arith.constant 0 : index
      %21 = vector.load %arg9[%c24, %c0_13] : memref<72x286xf32, #tpu.memory_space<vmem>>, vector<4x286xf32>
      tpu.vector_store %arg9[%c24, %c0_13], %20 {strides = array<i32>} : memref<72x286xf32, #tpu.memory_space<vmem>>, vector<4x286xf32>,
      %22 = vector.extract_strided_slice %13 {offsets = [0, 19], sizes = [4, 286], strides = [1, 1]} : vector<4x324xf32> to vector<4x286xf32>
      %c32 = arith.constant 32 : index
      %c0_14 = arith.constant 0 : index
      %23 = vector.load %arg9[%c32, %c0_14] : memref<72x286xf32, #tpu.memory_space<vmem>>, vector<4x286xf32>
      tpu.vector_store %arg9[%c32, %c0_14], %22 {strides = array<i32>} : memref<72x286xf32, #tpu.memory_space<vmem>>, vector<4x286xf32>,
      %24 = vector.extract_strided_slice %13 {offsets = [0, 20], sizes = [4, 286], strides = [1, 1]} : vector<4x324xf32> to vector<4x286xf32>
      %c40 = arith.constant 40 : index
      %c0_15 = arith.constant 0 : index
      %25 = vector.load %arg9[%c40, %c0_15] : memref<72x286xf32, #tpu.memory_space<vmem>>, vector<4x286xf32>
      tpu.vector_store %arg9[%c40, %c0_15], %24 {strides = array<i32>} : memref<72x286xf32, #tpu.memory_space<vmem>>, vector<4x286xf32>,
      %26 = vector.extract_strided_slice %13 {offsets = [0, 36], sizes = [4, 286], strides = [1, 1]} : vector<4x324xf32> to vector<4x286xf32>
      %c48 = arith.constant 48 : index
      %c0_16 = arith.constant 0 : index
      %27 = vector.load %arg9[%c48, %c0_16] : memref<72x286xf32, #tpu.memory_space<vmem>>, vector<4x286xf32>
      tpu.vector_store %arg9[%c48, %c0_16], %26 {strides = array<i32>} : memref<72x286xf32, #tpu.memory_space<vmem>>, vector<4x286xf32>,
      %28 = vector.extract_strided_slice %13 {offsets = [0, 37], sizes = [4, 286], strides = [1, 1]} : vector<4x324xf32> to vector<4x286xf32>
      %c56 = arith.constant 56 : index
      %c0_17 = arith.constant 0 : index
      %29 = vector.load %arg9[%c56, %c0_17] : memref<72x286xf32, #tpu.memory_space<vmem>>, vector<4x286xf32>
      tpu.vector_store %arg9[%c56, %c0_17], %28 {strides = array<i32>} : memref<72x286xf32, #tpu.memory_space<vmem>>, vector<4x286xf32>,
      %30 = vector.extract_strided_slice %13 {offsets = [0, 38], sizes = [4, 286], strides = [1, 1]} : vector<4x324xf32> to vector<4x286xf32>
      %c64 = arith.constant 64 : index
      %c0_18 = arith.constant 0 : index
      %31 = vector.load %arg9[%c64, %c0_18] : memref<72x286xf32, #tpu.memory_space<vmem>>, vector<4x286xf32>
      tpu.vector_store %arg9[%c64, %c0_18], %30 {strides = array<i32>} : memref<72x286xf32, #tpu.memory_space<vmem>>, vector<4x286xf32>,
      %c0_19 = arith.constant 0 : index
      %c0_20 = arith.constant 0 : index
      %32 = vector.load %arg4[%c0_19, %c0_20] : memref<8x72xf32, #tpu.memory_space<vmem>>, vector<8x72xf32>
      %c0_21 = arith.constant 0 : index
      %c0_22 = arith.constant 0 : index
      %33 = vector.load %arg9[%c0_21, %c0_22] : memref<72x286xf32, #tpu.memory_space<vmem>>, vector<72x286xf32>
      %cst_23 = arith.constant dense<0.000000e+00> : vector<8x286xf32>
      %34 = tpu.matmul %32, %33, %cst_23 {dimension_numbers = #tpu.dot_dimension_numbers<[1], [0], [0], [1], [0, 0, 1, 1], [], []>} : vector<8x72xf32>, vector<72x286xf32>, vector<8x286xf32> -> vector<8x286xf32>
      %c2_i32 = arith.constant 2 : i32
      %35 = arith.muli %arg1, %c2_i32 : i32
      %c0_i32_24 = arith.constant 0 : i32
      %36 = arith.addi %35, %c0_i32_24 : i32
      %37 = arith.index_cast %36 : i32 to index
      %c0_25 = arith.constant 0 : index
      %c0_26 = arith.constant 0 : index
      %38 = vector.load %arg8[%37, %c0_25, %c0_26] : memref<2x8x286xf32, #tpu.memory_space<vmem>>, vector<1x8x286xf32>
      %39 = vector.shape_cast %38 : vector<1x8x286xf32> to vector<8x286xf32>
      %40 = vector.shape_cast %34 : vector<8x286xf32> to vector<1x8x286xf32>
      tpu.vector_store %arg8[%37, %c0_25, %c0_26], %40 {strides = array<i32>} : memref<2x8x286xf32, #tpu.memory_space<vmem>>, vector<1x8x286xf32>,
      %41 = vector.broadcast %9 : vector<1x286xf32> to vector<8x286xf32>
      %42 = arith.mulf %34, %41 : vector<8x286xf32>
      %cst_27 = arith.constant dense<0.000000e+00> : vector<8xf32>
      %43 = vector.multi_reduction <add>, %42, %cst_27 [1] : vector<8x286xf32> to vector<8xf32>
      %44 = vector.shape_cast %43 : vector<8xf32> to vector<8x1xf32>
      %45 = arith.addf %10, %44 : vector<8x1xf32>
      %46 = arith.mulf %42, %34 : vector<8x286xf32>
      %cst_28 = arith.constant dense<0.000000e+00> : vector<8xf32>
      %47 = vector.multi_reduction <add>, %46, %cst_28 [1] : vector<8x286xf32> to vector<8xf32>
      %48 = vector.shape_cast %47 : vector<8xf32> to vector<8x1xf32>
      %49 = arith.addf %11, %48 : vector<8x1xf32>
      %c1 = arith.constant 1 : index
      %c0_29 = arith.constant 0 : index
      %c0_30 = arith.constant 0 : index
      %50 = vector.load %arg3[%c1, %c0_29, %c0_30] : memref<2x4x324xf32, #tpu.memory_space<vmem>>, vector<1x4x324xf32>
      %51 = vector.shape_cast %50 : vector<1x4x324xf32> to vector<4x324xf32>
      %52 = vector.extract_strided_slice %51 {offsets = [0, 0], sizes = [4, 286], strides = [1, 1]} : vector<4x324xf32> to vector<4x286xf32>
      %c0_31 = arith.constant 0 : index
      %c0_32 = arith.constant 0 : index
      %53 = vector.load %arg9[%c0_31, %c0_32] : memref<72x286xf32, #tpu.memory_space<vmem>>, vector<4x286xf32>
      tpu.vector_store %arg9[%c0_31, %c0_32], %52 {strides = array<i32>} : memref<72x286xf32, #tpu.memory_space<vmem>>, vector<4x286xf32>,
      %54 = vector.extract_strided_slice %51 {offsets = [0, 1], sizes = [4, 286], strides = [1, 1]} : vector<4x324xf32> to vector<4x286xf32>
      %c8_33 = arith.constant 8 : index
      %c0_34 = arith.constant 0 : index
      %55 = vector.load %arg9[%c8_33, %c0_34] : memref<72x286xf32, #tpu.memory_space<vmem>>, vector<4x286xf32>
      tpu.vector_store %arg9[%c8_33, %c0_34], %54 {strides = array<i32>} : memref<72x286xf32, #tpu.memory_space<vmem>>, vector<4x286xf32>,
      %56 = vector.extract_strided_slice %51 {offsets = [0, 2], sizes = [4, 286], strides = [1, 1]} : vector<4x324xf32> to vector<4x286xf32>
      %c16_35 = arith.constant 16 : index
      %c0_36 = arith.constant 0 : index
      %57 = vector.load %arg9[%c16_35, %c0_36] : memref<72x286xf32, #tpu.memory_space<vmem>>, vector<4x286xf32>
      tpu.vector_store %arg9[%c16_35, %c0_36], %56 {strides = array<i32>} : memref<72x286xf32, #tpu.memory_space<vmem>>, vector<4x286xf32>,
      %58 = vector.extract_strided_slice %51 {offsets = [0, 18], sizes = [4, 286], strides = [1, 1]} : vector<4x324xf32> to vector<4x286xf32>
      %c24_37 = arith.constant 24 : index
      %c0_38 = arith.constant 0 : index
      %59 = vector.load %arg9[%c24_37, %c0_38] : memref<72x286xf32, #tpu.memory_space<vmem>>, vector<4x286xf32>
      tpu.vector_store %arg9[%c24_37, %c0_38], %58 {strides = array<i32>} : memref<72x286xf32, #tpu.memory_space<vmem>>, vector<4x286xf32>,
      %60 = vector.extract_strided_slice %51 {offsets = [0, 19], sizes = [4, 286], strides = [1, 1]} : vector<4x324xf32> to vector<4x286xf32>
      %c32_39 = arith.constant 32 : index
      %c0_40 = arith.constant 0 : index
      %61 = vector.load %arg9[%c32_39, %c0_40] : memref<72x286xf32, #tpu.memory_space<vmem>>, vector<4x286xf32>
      tpu.vector_store %arg9[%c32_39, %c0_40], %60 {strides = array<i32>} : memref<72x286xf32, #tpu.memory_space<vmem>>, vector<4x286xf32>,
      %62 = vector.extract_strided_slice %51 {offsets = [0, 20], sizes = [4, 286], strides = [1, 1]} : vector<4x324xf32> to vector<4x286xf32>
      %c40_41 = arith.constant 40 : index
      %c0_42 = arith.constant 0 : index
      %63 = vector.load %arg9[%c40_41, %c0_42] : memref<72x286xf32, #tpu.memory_space<vmem>>, vector<4x286xf32>
      tpu.vector_store %arg9[%c40_41, %c0_42], %62 {strides = array<i32>} : memref<72x286xf32, #tpu.memory_space<vmem>>, vector<4x286xf32>,
      %64 = vector.extract_strided_slice %51 {offsets = [0, 36], sizes = [4, 286], strides = [1, 1]} : vector<4x324xf32> to vector<4x286xf32>
      %c48_43 = arith.constant 48 : index
      %c0_44 = arith.constant 0 : index
      %65 = vector.load %arg9[%c48_43, %c0_44] : memref<72x286xf32, #tpu.memory_space<vmem>>, vector<4x286xf32>
      tpu.vector_store %arg9[%c48_43, %c0_44], %64 {strides = array<i32>} : memref<72x286xf32, #tpu.memory_space<vmem>>, vector<4x286xf32>,
      %66 = vector.extract_strided_slice %51 {offsets = [0, 37], sizes = [4, 286], strides = [1, 1]} : vector<4x324xf32> to vector<4x286xf32>
      %c56_45 = arith.constant 56 : index
      %c0_46 = arith.constant 0 : index
      %67 = vector.load %arg9[%c56_45, %c0_46] : memref<72x286xf32, #tpu.memory_space<vmem>>, vector<4x286xf32>
      tpu.vector_store %arg9[%c56_45, %c0_46], %66 {strides = array<i32>} : memref<72x286xf32, #tpu.memory_space<vmem>>, vector<4x286xf32>,
      %68 = vector.extract_strided_slice %51 {offsets = [0, 38], sizes = [4, 286], strides = [1, 1]} : vector<4x324xf32> to vector<4x286xf32>
      %c64_47 = arith.constant 64 : index
      %c0_48 = arith.constant 0 : index
      %69 = vector.load %arg9[%c64_47, %c0_48] : memref<72x286xf32, #tpu.memory_space<vmem>>, vector<4x286xf32>
      tpu.vector_store %arg9[%c64_47, %c0_48], %68 {strides = array<i32>} : memref<72x286xf32, #tpu.memory_space<vmem>>, vector<4x286xf32>,
      %c0_49 = arith.constant 0 : index
      %c0_50 = arith.constant 0 : index
      %70 = vector.load %arg4[%c0_49, %c0_50] : memref<8x72xf32, #tpu.memory_space<vmem>>, vector<8x72xf32>
      %c0_51 = arith.constant 0 : index
      %c0_52 = arith.constant 0 : index
      %71 = vector.load %arg9[%c0_51, %c0_52] : memref<72x286xf32, #tpu.memory_space<vmem>>, vector<72x286xf32>
      %cst_53 = arith.constant dense<0.000000e+00> : vector<8x286xf32>
      %72 = tpu.matmul %70, %71, %cst_53 {dimension_numbers = #tpu.dot_dimension_numbers<[1], [0], [0], [1], [0, 0, 1, 1], [], []>} : vector<8x72xf32>, vector<72x286xf32>, vector<8x286xf32> -> vector<8x286xf32>
      %c2_i32_54 = arith.constant 2 : i32
      %73 = arith.muli %arg1, %c2_i32_54 : i32
      %c1_i32_55 = arith.constant 1 : i32
      %74 = arith.addi %73, %c1_i32_55 : i32
      %75 = arith.index_cast %74 : i32 to index
      %c0_56 = arith.constant 0 : index
      %c0_57 = arith.constant 0 : index
      %76 = vector.load %arg8[%75, %c0_56, %c0_57] : memref<2x8x286xf32, #tpu.memory_space<vmem>>, vector<1x8x286xf32>
      %77 = vector.shape_cast %76 : vector<1x8x286xf32> to vector<8x286xf32>
      %78 = vector.shape_cast %72 : vector<8x286xf32> to vector<1x8x286xf32>
      tpu.vector_store %arg8[%75, %c0_56, %c0_57], %78 {strides = array<i32>} : memref<2x8x286xf32, #tpu.memory_space<vmem>>, vector<1x8x286xf32>,
      %79 = vector.broadcast %9 : vector<1x286xf32> to vector<8x286xf32>
      %80 = arith.mulf %72, %79 : vector<8x286xf32>
      %cst_58 = arith.constant dense<0.000000e+00> : vector<8xf32>
      %81 = vector.multi_reduction <add>, %80, %cst_58 [1] : vector<8x286xf32> to vector<8xf32>
      %82 = vector.shape_cast %81 : vector<8xf32> to vector<8x1xf32>
      %83 = arith.addf %45, %82 : vector<8x1xf32>
      %84 = arith.mulf %80, %72 : vector<8x286xf32>
      %cst_59 = arith.constant dense<0.000000e+00> : vector<8xf32>
      %85 = vector.multi_reduction <add>, %84, %cst_59 [1] : vector<8x286xf32> to vector<8xf32>
      %86 = vector.shape_cast %85 : vector<8xf32> to vector<8x1xf32>
      %87 = arith.addf %49, %86 : vector<8x1xf32>
      %c0_60 = arith.constant 0 : index
      %c0_61 = arith.constant 0 : index
      %88 = vector.load %arg10[%c0_60, %c0_61] : memref<8x1xf32, #tpu.memory_space<vmem>>, vector<8x1xf32>
      %89 = arith.addf %88, %83 : vector<8x1xf32>
      %c0_62 = arith.constant 0 : index
      %c0_63 = arith.constant 0 : index
      %90 = vector.load %arg10[%c0_62, %c0_63] : memref<8x1xf32, #tpu.memory_space<vmem>>, vector<8x1xf32>
      tpu.vector_store %arg10[%c0_62, %c0_63], %89 {strides = array<i32>} : memref<8x1xf32, #tpu.memory_space<vmem>>, vector<8x1xf32>,
      %c0_64 = arith.constant 0 : index
      %c0_65 = arith.constant 0 : index
      %91 = vector.load %arg11[%c0_64, %c0_65] : memref<8x1xf32, #tpu.memory_space<vmem>>, vector<8x1xf32>
      %92 = arith.addf %91, %87 : vector<8x1xf32>
      %c0_66 = arith.constant 0 : index
      %c0_67 = arith.constant 0 : index
      %93 = vector.load %arg11[%c0_66, %c0_67] : memref<8x1xf32, #tpu.memory_space<vmem>>, vector<8x1xf32>
      tpu.vector_store %arg11[%c0_66, %c0_67], %92 {strides = array<i32>} : memref<8x1xf32, #tpu.memory_space<vmem>>, vector<8x1xf32>,
    } else {
    }
    %c1_i32 = arith.constant 1 : i32
    %3 = arith.cmpi eq, %arg0, %c1_i32 : i32
    %4 = arith.extui %3 : i1 to i32
    %c0_i32_1 = arith.constant 0 : i32
    %5 = arith.cmpi ne, %4, %c0_i32_1 : i32
    scf.if %5 {
      %c0_i32_2 = arith.constant 0 : i32
      %6 = arith.cmpi eq, %arg1, %c0_i32_2 : i32
      %7 = arith.extui %6 : i1 to i32
      %c0_i32_3 = arith.constant 0 : i32
      %8 = arith.cmpi ne, %7, %c0_i32_3 : i32
      scf.if %8 {
        %c0_19 = arith.constant 0 : index
        %c0_20 = arith.constant 0 : index
        %35 = vector.load %arg10[%c0_19, %c0_20] : memref<8x1xf32, #tpu.memory_space<vmem>>, vector<8x1xf32>
        %cst = arith.constant 0.001953125 : f32
        %36 = vector.broadcast %cst : f32 to vector<8x1xf32>
        %37 = arith.mulf %35, %36 : vector<8x1xf32>
        %c0_21 = arith.constant 0 : index
        %c0_22 = arith.constant 0 : index
        %38 = vector.load %arg11[%c0_21, %c0_22] : memref<8x1xf32, #tpu.memory_space<vmem>>, vector<8x1xf32>
        %cst_23 = arith.constant 0.001953125 : f32
        %39 = vector.broadcast %cst_23 : f32 to vector<8x1xf32>
        %40 = arith.mulf %38, %39 : vector<8x1xf32>
        %41 = arith.mulf %37, %37 : vector<8x1xf32>
        %42 = arith.subf %40, %41 : vector<8x1xf32>
        %c0_24 = arith.constant 0 : index
        %c0_25 = arith.constant 0 : index
        %43 = vector.load %arg5[%c0_24, %c0_25] : memref<8x1xf32, #tpu.memory_space<vmem>>, vector<8x1xf32>
        %cst_26 = arith.constant 9.99999974E-6 : f32
        %44 = vector.broadcast %cst_26 : f32 to vector<8x1xf32>
        %45 = arith.addf %42, %44 : vector<8x1xf32>
        %46 = math.rsqrt %45 : vector<8x1xf32>
        %47 = arith.mulf %43, %46 : vector<8x1xf32>
        %c0_27 = arith.constant 0 : index
        %c0_28 = arith.constant 0 : index
        %48 = vector.load %arg12[%c0_27, %c0_28] : memref<8x1xf32, #tpu.memory_space<vmem>>, vector<8x1xf32>
        tpu.vector_store %arg12[%c0_27, %c0_28], %47 {strides = array<i32>} : memref<8x1xf32, #tpu.memory_space<vmem>>, vector<8x1xf32>,
        %c0_29 = arith.constant 0 : index
        %c0_30 = arith.constant 0 : index
        %49 = vector.load %arg6[%c0_29, %c0_30] : memref<8x1xf32, #tpu.memory_space<vmem>>, vector<8x1xf32>
        %50 = arith.mulf %37, %47 : vector<8x1xf32>
        %51 = arith.subf %49, %50 : vector<8x1xf32>
        %c0_31 = arith.constant 0 : index
        %c0_32 = arith.constant 0 : index
        %52 = vector.load %arg13[%c0_31, %c0_32] : memref<8x1xf32, #tpu.memory_space<vmem>>, vector<8x1xf32>
        tpu.vector_store %arg13[%c0_31, %c0_32], %51 {strides = array<i32>} : memref<8x1xf32, #tpu.memory_space<vmem>>, vector<8x1xf32>,
      } else {
      }
      %c0 = arith.constant 0 : index
      %c0_4 = arith.constant 0 : index
      %9 = vector.load %arg12[%c0, %c0_4] : memref<8x1xf32, #tpu.memory_space<vmem>>, vector<8x1xf32>
      %10 = vector.shape_cast %9 : vector<8x1xf32> to vector<8x1xf32>
      %11 = vector.broadcast %10 : vector<8x1xf32> to vector<8x286xf32>
      %c0_5 = arith.constant 0 : index
      %c0_6 = arith.constant 0 : index
      %12 = vector.load %arg13[%c0_5, %c0_6] : memref<8x1xf32, #tpu.memory_space<vmem>>, vector<8x1xf32>
      %13 = vector.shape_cast %12 : vector<8x1xf32> to vector<8x1xf32>
      %14 = vector.broadcast %13 : vector<8x1xf32> to vector<8x286xf32>
      %c2_i32 = arith.constant 2 : i32
      %15 = arith.muli %arg1, %c2_i32 : i32
      %c0_i32_7 = arith.constant 0 : i32
      %16 = arith.addi %15, %c0_i32_7 : i32
      %17 = arith.index_cast %16 : i32 to index
      %c0_8 = arith.constant 0 : index
      %c0_9 = arith.constant 0 : index
      %18 = vector.load %arg8[%17, %c0_8, %c0_9] : memref<2x8x286xf32, #tpu.memory_space<vmem>>, vector<1x8x286xf32>
      %19 = vector.shape_cast %18 : vector<1x8x286xf32> to vector<8x286xf32>
      %20 = arith.mulf %19, %11 : vector<8x286xf32>
      %21 = arith.addf %20, %14 : vector<8x286xf32>
      %c0_10 = arith.constant 0 : index
      %c0_11 = arith.constant 0 : index
      %c0_12 = arith.constant 0 : index
      %22 = vector.load %arg7[%c0_10, %c0_11, %c0_12] : memref<2x8x286xf32, #tpu.memory_space<vmem>>, vector<1x8x286xf32>
      %23 = vector.shape_cast %22 : vector<1x8x286xf32> to vector<8x286xf32>
      %24 = vector.shape_cast %21 : vector<8x286xf32> to vector<1x8x286xf32>
      tpu.vector_store %arg7[%c0_10, %c0_11, %c0_12], %24 {strides = array<i32>} : memref<2x8x286xf32, #tpu.memory_space<vmem>>, vector<1x8x286xf32>,
      %c2_i32_13 = arith.constant 2 : i32
      %25 = arith.muli %arg1, %c2_i32_13 : i32
      %c1_i32_14 = arith.constant 1 : i32
      %26 = arith.addi %25, %c1_i32_14 : i32
      %27 = arith.index_cast %26 : i32 to index
      %c0_15 = arith.constant 0 : index
      %c0_16 = arith.constant 0 : index
      %28 = vector.load %arg8[%27, %c0_15, %c0_16] : memref<2x8x286xf32, #tpu.memory_space<vmem>>, vector<1x8x286xf32>
      %29 = vector.shape_cast %28 : vector<1x8x286xf32> to vector<8x286xf32>
      %30 = arith.mulf %29, %11 : vector<8x286xf32>
      %31 = arith.addf %30, %14 : vector<8x286xf32>
      %c1 = arith.constant 1 : index
      %c0_17 = arith.constant 0 : index
      %c0_18 = arith.constant 0 : index
      %32 = vector.load %arg7[%c1, %c0_17, %c0_18] : memref<2x8x286xf32, #tpu.memory_space<vmem>>, vector<1x8x286xf32>
      %33 = vector.shape_cast %32 : vector<1x8x286xf32> to vector<8x286xf32>
      %34 = vector.shape_cast %31 : vector<8x286xf32> to vector<1x8x286xf32>
      tpu.vector_store %arg7[%c1, %c0_17, %c0_18], %34 {strides = array<i32>} : memref<2x8x286xf32, #tpu.memory_space<vmem>>, vector<1x8x286xf32>,
    } else {
    }
    return
  }
  func.func @transform_0(%arg0: i32, %arg1: i32) -> (i32, i32) {
    %c0_i32 = arith.constant 0 : i32
    %c0_i32_0 = arith.constant 0 : i32
    %c0_i32_1 = arith.constant 0 : i32
    return %c0_i32, %c0_i32_0 : i32, i32
  }
  func.func @transform_1(%arg0: i32, %arg1: i32) -> (i32, i32, i32) {
    %c1_i32 = arith.constant 1 : i32
    %0 = arith.subi %c1_i32, %arg0 : i32
    %1 = arith.muli %0, %arg1 : i32
    %c0_i32 = arith.constant 0 : i32
    %2 = arith.muli %arg0, %c0_i32 : i32
    %3 = arith.addi %1, %2 : i32
    %c0_i32_0 = arith.constant 0 : i32
    %c0_i32_1 = arith.constant 0 : i32
    %c0_i32_2 = arith.constant 0 : i32
    return %3, %c0_i32_0, %c0_i32_1 : i32, i32, i32
  }
  func.func @transform_2(%arg0: i32, %arg1: i32) -> (i32, i32) {
    %c0_i32 = arith.constant 0 : i32
    %c0_i32_0 = arith.constant 0 : i32
    %c0_i32_1 = arith.constant 0 : i32
    return %c0_i32, %c0_i32_0 : i32, i32
  }
  func.func @transform_3(%arg0: i32, %arg1: i32) -> (i32, i32) {
    %c0_i32 = arith.constant 0 : i32
    %c0_i32_0 = arith.constant 0 : i32
    %c0_i32_1 = arith.constant 0 : i32
    return %c0_i32, %c0_i32_0 : i32, i32
  }
  func.func @transform_4(%arg0: i32, %arg1: i32) -> (i32, i32) {
    %c0_i32 = arith.constant 0 : i32
    %c0_i32_0 = arith.constant 0 : i32
    %c0_i32_1 = arith.constant 0 : i32
    return %c0_i32, %c0_i32_0 : i32, i32
  }
  func.func @transform_5(%arg0: i32, %arg1: i32) -> (i32, i32, i32) {
    %0 = arith.muli %arg0, %arg1 : i32
    %c0_i32 = arith.constant 0 : i32
    %c0_i32_0 = arith.constant 0 : i32
    %c0_i32_1 = arith.constant 0 : i32
    return %0, %c0_i32, %c0_i32_0 : i32, i32, i32
  }
}

</mosaic_0001>

<llo_original>
// kernel: basic_conv2d.1
$region0: #{basic_conv2d.1}
  #allocation0 [shape = 'u32[]', space=smem, size = 0x4, offset = 0x4, fixed_abs, tag = 'smem constant byte address 0x4 - core index']
  #allocation1 [shape = 'u32[72,128]{1,0:T(1,128)}', space=vmem, size = 0x9000, scoped, tag = 'internal scratch']
  #allocation2 [shape = 'f32[2,8,286]{2,1,0:T(8,128)}', space=vmem, size = 0x6000, scoped, tag = 'scratch operand']
  #allocation3 [shape = 'f32[72,286]{1,0:T(8,128)}', space=vmem, size = 0x1b000, scoped, tag = 'scratch operand']
  #allocation4 [shape = 'f32[8,1]{1,0:T(8,128)}', space=vmem, size = 0x1000, scoped, tag = 'scratch operand']
  #allocation5 [shape = 'f32[8,1]{1,0:T(8,128)}', space=vmem, size = 0x1000, scoped, tag = 'scratch operand']
  #allocation6 [shape = 'f32[8,1]{1,0:T(8,128)}', space=vmem, size = 0x1000, scoped, tag = 'scratch operand']
  #allocation7 [shape = 'f32[8,1]{1,0:T(8,128)}', space=vmem, size = 0x1000, scoped, tag = 'scratch operand']
  %s0 = inlined_call_operand.vmem [shape: f32[1,286], index: 0, kind: input, shape index: {}]
  %s1 = inlined_call_operand.vmem [shape: f32[2,4,324], index: 1, kind: input, shape index: {}]
  %s2 = inlined_call_operand.vmem [shape: f32[8,72], index: 2, kind: input, shape index: {}]
  %s3 = inlined_call_operand.vmem [shape: f32[8,1], index: 3, kind: input, shape index: {}]
  %s4 = inlined_call_operand.vmem [shape: f32[8,1], index: 4, kind: input, shape index: {}]
  %s5 = inlined_call_operand.vmem [shape: f32[2,8,286], index: 5, kind: output, shape index: {}]
  %s6 = sld [smem:[#allocation0]]
  $region69: #{basic_conv2d.1} parent=0
    _
  %s8 = ssub.s32 1, %s6
  %s9 = scalar_select 0, %s8, %s6
  loop: start=0, step=1, limit=4
  $region2: #{basic_conv2d.1} parent=0 // loop_pre_header
    _
  $region3: #{basic_conv2d.1} parent=0 // loop_header
    %s11 = sphi 0, %s15
    %p12 = scmp.ge.s32.totalorder %s11, 4
    %s18 = sphi 0, %s30
    %s19 = sphi 0, %s26
    %s20 = sphi 0, %s18
    %s21 = sphi 0, %s19
    %s22 = sphi 0, %s20
    %s23 = sphi 0, %s21
    %s31 = sphi 0, %s31
    %s33 = sphi 0, %s31
    %s34 = sphi 0, %s33
    %s48 = sphi 0, %s34
    %s58 = sphi 0, %s60
    %s61 = sphi 0, %s58
    %s62 = sphi 0, %s61
    %s78 = sphi 0, %s62
    %s82 = sphi 0, %s82
    %s84 = sphi 0, %s82
    %s85 = sphi 0, %s84
    %s99 = sphi 0, %s85
    %s103 = sphi 0, %s103
    %s105 = sphi 0, %s103
    %s106 = sphi 0, %s105
    %s120 = sphi 0, %s106
    %s124 = sphi 0, %s124
    %s126 = sphi 0, %s124
    %s127 = sphi 0, %s126
    %s141 = sphi 0, %s127
    %s149 = sphi 0, %s151
    %s152 = sphi 0, %s149
    %s153 = sphi 0, %s152
    %s169 = sphi 0, %s153
  $region4: #{basic_conv2d.1} parent=0 // loop_header_branch
    %14 = sbr.rel (%p12) target = $region8
  $region5: #{basic_conv2d.1} parent=0 // loop_body
    %s16 = ssub.s32 %s11, 1
    %s17 = ssub.s32 %s11, 2
    %s24 = sadd.s32 1, %s19
    %p25 = scmp.ge.s32.totalorder %s24, 1
    %s26 = scalar_select %p25, 0, %s24
    %s27 = sadd.s32 1, %s18
    %s28 = scalar_select %p25, %s27, %s18
    %p29 = scmp.ge.s32.totalorder %s28, 2
    %s30 = scalar_select %p29, 0, %s28
    %s32 = sadd.s32 %s31, 1
    %p35 = scmp.eq.s32.totalorder %s11, 1
    %p36 = scmp.ne.s32.totalorder %s31, %s33
    %p37 = scmp.eq.s32.totalorder %s11, 0
    %p38 = por %p36, %p37
    %p39 = scmp.ne.s32.totalorder %s31, %s33
    %p40 = scmp.eq.s32.totalorder %s16, 1
    %p41 = por %p39, %p40
    %p42 = scmp.ne.s32.totalorder %s33, %s34
    %p43 = scmp.eq.s32.totalorder %s16, 0
    %p44 = por %p42, %p43
    %p45 = scmp.ne.s32.totalorder %s33, %s34
    %p46 = scmp.eq.s32.totalorder %s17, 1
    %p47 = por %p45, %p46
    %p49 = scmp.ne.s32.totalorder %s34, %s48
    %p50 = scmp.eq.s32.totalorder %s17, 0
    %p51 = por %p49, %p50
    %s52 = ssub.s32 1, %s18
    %s53 = smul.u32 %s52, %s19
    %s54 = ssub.s32 1, %s30
    %s55 = smul.u32 %s54, %s26
    %s56 = ssub.s32 %s53, %s55
    %p57 = scmp.eq.s32.totalorder %s56, 0
    %s59 = sadd.s32 %s58, 1
    %s60 = scalar_select %p57, %s58, %s59
    %p63 = pneg %p57
    %p64 = scmp.eq.s32.totalorder %s11, 1
    %p65 = por %p63, %p64
    %p66 = scmp.ne.s32.totalorder %s58, %s61
    %p67 = scmp.eq.s32.totalorder %s11, 0
    %p68 = por %p66, %p67
    %p69 = scmp.ne.s32.totalorder %s58, %s61
    %p70 = scmp.eq.s32.totalorder %s16, 1
    %p71 = por %p69, %p70
    %p72 = scmp.ne.s32.totalorder %s61, %s62
    %p73 = scmp.eq.s32.totalorder %s16, 0
    %p74 = por %p72, %p73
    %p75 = scmp.ne.s32.totalorder %s61, %s62
    %p76 = scmp.eq.s32.totalorder %s17, 1
    %p77 = por %p75, %p76
    %p79 = scmp.ne.s32.totalorder %s62, %s78
    %p80 = scmp.eq.s32.totalorder %s17, 0
    %p81 = por %p79, %p80
    %s83 = sadd.s32 %s82, 1
    %p86 = scmp.eq.s32.totalorder %s11, 1
    %p87 = scmp.ne.s32.totalorder %s82, %s84
    %p88 = scmp.eq.s32.totalorder %s11, 0
    %p89 = por %p87, %p88
    %p90 = scmp.ne.s32.totalorder %s82, %s84
    %p91 = scmp.eq.s32.totalorder %s16, 1
    %p92 = por %p90, %p91
    %p93 = scmp.ne.s32.totalorder %s84, %s85
    %p94 = scmp.eq.s32.totalorder %s16, 0
    %p95 = por %p93, %p94
    %p96 = scmp.ne.s32.totalorder %s84, %s85
    %p97 = scmp.eq.s32.totalorder %s17, 1
    %p98 = por %p96, %p97
    %p100 = scmp.ne.s32.totalorder %s85, %s99
    %p101 = scmp.eq.s32.totalorder %s17, 0
    %p102 = por %p100, %p101
    %s104 = sadd.s32 %s103, 1
    %p107 = scmp.eq.s32.totalorder %s11, 1
    %p108 = scmp.ne.s32.totalorder %s103, %s105
    %p109 = scmp.eq.s32.totalorder %s11, 0
    %p110 = por %p108, %p109
    %p111 = scmp.ne.s32.totalorder %s103, %s105
    %p112 = scmp.eq.s32.totalorder %s16, 1
    %p113 = por %p111, %p112
    %p114 = scmp.ne.s32.totalorder %s105, %s106
    %p115 = scmp.eq.s32.totalorder %s16, 0
    %p116 = por %p114, %p115
    %p117 = scmp.ne.s32.totalorder %s105, %s106
    %p118 = scmp.eq.s32.totalorder %s17, 1
    %p119 = por %p117, %p118
    %p121 = scmp.ne.s32.totalorder %s106, %s120
    %p122 = scmp.eq.s32.totalorder %s17, 0
    %p123 = por %p121, %p122
    %s125 = sadd.s32 %s124, 1
    %p128 = scmp.eq.s32.totalorder %s11, 1
    %p129 = scmp.ne.s32.totalorder %s124, %s126
    %p130 = scmp.eq.s32.totalorder %s11, 0
    %p131 = por %p129, %p130
    %p132 = scmp.ne.s32.totalorder %s124, %s126
    %p133 = scmp.eq.s32.totalorder %s16, 1
    %p134 = por %p132, %p133
    %p135 = scmp.ne.s32.totalorder %s126, %s127
    %p136 = scmp.eq.s32.totalorder %s16, 0
    %p137 = por %p135, %p136
    %p138 = scmp.ne.s32.totalorder %s126, %s127
    %p139 = scmp.eq.s32.totalorder %s17, 1
    %p140 = por %p138, %p139
    %p142 = scmp.ne.s32.totalorder %s127, %s141
    %p143 = scmp.eq.s32.totalorder %s17, 0
    %p144 = por %p142, %p143
    %s145 = smul.u32 %s18, %s19
    %s146 = smul.u32 %s30, %s26
    %s147 = ssub.s32 %s145, %s146
    %p148 = scmp.eq.s32.totalorder %s147, 0
    %s150 = sadd.s32 %s149, 1
    %s151 = scalar_select %p148, %s149, %s150
    %p154 = pneg %p148
    %p155 = scmp.eq.s32.totalorder %s11, 1
    %p156 = por %p154, %p155
    %p157 = scmp.ne.s32.totalorder %s149, %s152
    %p158 = scmp.eq.s32.totalorder %s11, 0
    %p159 = por %p157, %p158
    %p160 = scmp.ne.s32.totalorder %s149, %s152
    %p161 = scmp.eq.s32.totalorder %s16, 1
    %p162 = por %p160, %p161
    %p163 = scmp.ne.s32.totalorder %s152, %s153
    %p164 = scmp.eq.s32.totalorder %s16, 0
    %p165 = por %p163, %p164
    %p166 = scmp.ne.s32.totalorder %s152, %s153
    %p167 = scmp.eq.s32.totalorder %s17, 1
    %p168 = por %p166, %p167
    %p170 = scmp.ne.s32.totalorder %s153, %s169
    %p171 = scmp.eq.s32.totalorder %s17, 0
    %p172 = por %p170, %p171
    %p173 = scmp.le.s32.totalorder 1, %s11
    %p174 = scmp.lt.s32.totalorder %s11, 3
    %p175 = pnand %p173, %p174
    %p176 = pneg %p175
    // Predicated region
    $region9: #{basic_conv2d.1} parent=5 // pred_check
      _
    $region10: #{basic_conv2d.1} parent=5 // pred_check_branch
      %178 = sbr.rel (%p175) target = $region12
    $region11: #{basic_conv2d.1} parent=5 // pred_region
      %s179 = ssub.s32 %s11, 1
      // Predicated region
      $region13: #{basic_conv2d.1} parent=11 // pred_check
        %p180 = pneg %p44
      $region14: #{basic_conv2d.1} parent=11 // pred_check_branch
        %182 = sbr.rel (%p180) target = $region16
      $region15: #{basic_conv2d.1} parent=11 // pred_region
        _
      $region16: #{basic_conv2d.1} parent=11 // pred_fallthru
        _
      // Predicated region
      $region17: #{basic_conv2d.1} parent=11 // pred_check
        %p183 = pneg %p95
      $region18: #{basic_conv2d.1} parent=11 // pred_check_branch
        %185 = sbr.rel (%p183) target = $region20
      $region19: #{basic_conv2d.1} parent=11 // pred_region
        _
      $region20: #{basic_conv2d.1} parent=11 // pred_fallthru
        _
      // Predicated region
      $region21: #{basic_conv2d.1} parent=11 // pred_check
        %p186 = pneg %p116
      $region22: #{basic_conv2d.1} parent=11 // pred_check_branch
        %188 = sbr.rel (%p186) target = $region24
      $region23: #{basic_conv2d.1} parent=11 // pred_region
        _
      $region24: #{basic_conv2d.1} parent=11 // pred_fallthru
        _
      // Predicated region
      $region25: #{basic_conv2d.1} parent=11 // pred_check
        %p189 = pneg %p137
      $region26: #{basic_conv2d.1} parent=11 // pred_check_branch
        %191 = sbr.rel (%p189) target = $region28
      $region27: #{basic_conv2d.1} parent=11 // pred_region
        _
      $region28: #{basic_conv2d.1} parent=11 // pred_fallthru
        _
    $region12: #{basic_conv2d.1} parent=5 // pred_fallthru
      _
    %p192 = scmp.lt.s32.totalorder %s11, 2
    // Predicated region
    $region29: #{basic_conv2d.1} parent=5 // pred_check
      %p193 = pneg %p192
    $region30: #{basic_conv2d.1} parent=5 // pred_check_branch
      %195 = sbr.rel (%p193) target = $region32
    $region31: #{basic_conv2d.1} parent=5 // pred_region
      // Predicated region
      $region33: #{basic_conv2d.1} parent=31 // pred_check
        %p196 = pneg %p68
      $region34: #{basic_conv2d.1} parent=31 // pred_check_branch
        %198 = sbr.rel (%p196) target = $region36
      $region35: #{basic_conv2d.1} parent=31 // pred_region
        %s199 = ssub.s32 1, %s18
        %s200 = smul.u32 %s199, %s19
        %s201 = smul.u32 2, %s200
        %p202 = scmp.lt.s32.totalorder %s201, 1
        %s203 = scalar_select %p202, %s201, 1
        %s204 = smul.addr %s203, 3
        %s205 = smul.addr %s204, 4
        %s206 = scalar_lea.vmem %s1, %s205
        %s207 = ssub.s32 1, %s18
        %s208 = smul.u32 %s207, %s19
        %s209 = smul.u32 2, %s208
      $region36: #{basic_conv2d.1} parent=31 // pred_fallthru
        _
    $region32: #{basic_conv2d.1} parent=5 // pred_fallthru
      _
    %p210 = scmp.le.s32.totalorder 1, %s11
    %p211 = scmp.lt.s32.totalorder %s11, 3
    %p212 = pnand %p210, %p211
    %p213 = pneg %p212
    // Predicated region
    $region37: #{basic_conv2d.1} parent=5 // pred_check
      _
    $region38: #{basic_conv2d.1} parent=5 // pred_check_branch
      %215 = sbr.rel (%p212) target = $region40
    $region39: #{basic_conv2d.1} parent=5 // pred_region
      %s216 = ssub.s32 %s11, 1
      %p217 = pneg %p44
      %p218 = pneg %p41
      %s219 = ssub.s32 1, %s20
      %s220 = smul.u32 %s219, %s21
      %s221 = smul.u32 2, %s220
      %p222 = scmp.lt.s32.totalorder %s221, 1
      %s223 = scalar_select %p222, %s221, 1
      %s224 = smul.addr %s223, 3
      %s225 = smul.addr %s224, 4
      %s226 = scalar_lea.vmem %s1, %s225
      %p227 = pneg %p74
      %p228 = pneg %p71
      %p229 = pneg %p95
      %p230 = pneg %p92
      %p231 = pneg %p116
      %p232 = pneg %p113
      %p233 = pneg %p137
      %p234 = pneg %p134
      %p235 = pneg %p165
      %p236 = pneg %p162
      %s237 = smul.u32 %s20, %s21
      %s238 = smul.u32 2, %s237
      %p239 = scmp.lt.s32.totalorder %s238, 1
      %s240 = scalar_select %p239, %s238, 1
      %s241 = smul.addr %s240, 3
      %s242 = smul.addr %s241, 8
      %s243 = scalar_lea.vmem %s5, %s242
      %s244 = ssub.s32 1, %s20
      %s245 = smul.u32 %s244, %s21
      %s246 = smul.u32 2, %s245
      %p247 = scmp.lt.s32.totalorder %s246, 1
      %s248 = scalar_select %p247, %s246, 1
      %s249 = smul.addr %s248, 3
      %s250 = smul.addr %s249, 4
      %s251 = scalar_lea.vmem %s1, %s250
      %s252 = ssub.s32 1, %s20
      %s253 = smul.u32 %s252, %s21
      %s254 = smul.u32 2, %s253
      %s255 = smul.u32 %s20, %s21
      %s256 = smul.u32 2, %s255
      %p257 = scmp.lt.s32.totalorder %s256, 1
      %s258 = scalar_select %p257, %s256, 1
      %s259 = smul.addr %s258, 3
      %s260 = smul.addr %s259, 8
      %s261 = scalar_lea.vmem %s5, %s260
      %s262 = smul.u32 %s20, %s21
      %s263 = smul.u32 2, %s262
      %p264 = scmp.eq.s32.totalorder %s20, 0
      // Predicated region
      $region41: #{basic_conv2d.1} parent=39 // pred_check
        %p265 = pneg %p264
      $region42: #{basic_conv2d.1} parent=39 // pred_check_branch
        %267 = sbr.rel (%p265) target = $region44
      $region43: #{basic_conv2d.1} parent=39 // pred_region
        %p268 = scmp.eq.s32.totalorder %s21, 0
        // Predicated region
        $region45: #{basic_conv2d.1} parent=43 // pred_check
          %p269 = pneg %p268
        $region46: #{basic_conv2d.1} parent=43 // pred_check_branch
          %271 = sbr.rel (%p269) target = $region48
        $region47: #{basic_conv2d.1} parent=43 // pred_region
          %vm272 = vcmask 7168
          %273 = vst.msk [vmem:[#allocation4] sm:$0xff] %vm272, 0.0
          %274 = vst.msk [vmem:[#allocation5] sm:$0xff] %vm272, 0.0
          %275 = vst [vmem:[#allocation3] sm:$0xff] 0.0
          %276 = vst [vmem:[#allocation3 + $0x8] sm:$0xff] 0.0
          %vm277 = vcmask 244736
          %278 = vst.msk [vmem:[#allocation3 + $0x10] sm:$0xff] %vm277, 0.0
          %279 = vst [vmem:[#allocation3 + $0x18] sm:$0xff] 0.0
          %280 = vst [vmem:[#allocation3 + $0x20] sm:$0xff] 0.0
          %281 = vst.msk [vmem:[#allocation3 + $0x28] sm:$0xff] %vm277, 0.0
          %282 = vst [vmem:[#allocation3 + $0x30] sm:$0xff] 0.0
          %283 = vst [vmem:[#allocation3 + $0x38] sm:$0xff] 0.0
          %284 = vst.msk [vmem:[#allocation3 + $0x40] sm:$0xff] %vm277, 0.0
          %285 = vst [vmem:[#allocation3 + $0x48] sm:$0xff] 0.0
          %286 = vst [vmem:[#allocation3 + $0x50] sm:$0xff] 0.0
          %287 = vst.msk [vmem:[#allocation3 + $0x58] sm:$0xff] %vm277, 0.0
          %288 = vst [vmem:[#allocation3 + $0x60] sm:$0xff] 0.0
          %289 = vst [vmem:[#allocation3 + $0x68] sm:$0xff] 0.0
          %290 = vst.msk [vmem:[#allocation3 + $0x70] sm:$0xff] %vm277, 0.0
          %291 = vst [vmem:[#allocation3 + $0x78] sm:$0xff] 0.0
          %292 = vst [vmem:[#allocation3 + $0x80] sm:$0xff] 0.0
          %293 = vst.msk [vmem:[#allocation3 + $0x88] sm:$0xff] %vm277, 0.0
          %294 = vst [vmem:[#allocation3 + $0x90] sm:$0xff] 0.0
          %295 = vst [vmem:[#allocation3 + $0x98] sm:$0xff] 0.0
          %296 = vst.msk [vmem:[#allocation3 + $0xa0] sm:$0xff] %vm277, 0.0
          %297 = vst [vmem:[#allocation3 + $0xa8] sm:$0xff] 0.0
          %298 = vst [vmem:[#allocation3 + $0xb0] sm:$0xff] 0.0
          %299 = vst.msk [vmem:[#allocation3 + $0xb8] sm:$0xff] %vm277, 0.0
          %300 = vst [vmem:[#allocation3 + $0xc0] sm:$0xff] 0.0
          %301 = vst [vmem:[#allocation3 + $0xc8] sm:$0xff] 0.0
          %302 = vst.msk [vmem:[#allocation3 + $0xd0] sm:$0xff] %vm277, 0.0
        $region48: #{basic_conv2d.1} parent=43 // pred_fallthru
          _
        %v303 = vld [vmem:[%s0] sm:$0x7]
        %v304 = vld [vmem:[%s251] sm:$0xff]
        %v305 = vld [vmem:[%s251 + $0x8] sm:$0xf]
        %308 = vst [vmem:[#allocation1] ss:$2 sm:$0xff] %v304
        %s309 = scalar_lea.vmem [#allocation1], 16
        %310 = vst [vmem:[%s309] ss:$2 sm:$0xff] %v305
        %v311 = vld.sshfl [vmem:[#allocation1] sm:$0xff pattern:$0x75316420]
        %v312 = vld.sshfl [vmem:[#allocation1 + $0x8] sm:$0xff pattern:$0x75316420]
        %v313 = vld.sshfl [vmem:[#allocation1 + $0x10] sm:$0xff pattern:$0x75316420]
        %317 = vst [vmem:[#allocation3] sm:$0xf] %v311
        %318 = vst [vmem:[#allocation3 + $0x8] sm:$0xf] %v312
        %vm319 = vcmask 240640
        %320 = vst.msk [vmem:[#allocation3 + $0x10] sm:$0xf] %vm319, %v313
        %321 = vst [vmem:[#allocation1] ss:$2 sm:$0xff] %v304
        %s322 = scalar_lea.vmem [#allocation1], 16
        %323 = vst [vmem:[%s322] ss:$2 sm:$0xff] %v305
        %v324 = vld.sshfl [vmem:[#allocation1] sm:$0xff pattern:$0x75316420]
        %v325 = vld.sshfl [vmem:[#allocation1 + $0x8] sm:$0xff pattern:$0x75316420]
        %v326 = vld.sshfl [vmem:[#allocation1 + $0x10] sm:$0xff pattern:$0x75316420]
        %327 = vrot.lane.b32.xlu0 %v324, 127
        %v328 = vpop.permute.xlu0 %327
        %329 = vrot.lane.b32.xlu0 %v325, 127
        %v330 = vpop.permute.xlu0 %329
        %331 = vrot.lane.b32.xlu0 %v326, 127
        %v332 = vpop.permute.xlu0 %331
        %vm333 = vcmask 1039360
        %v334 = vsel %vm333, %v328, %v330
        %v335 = vsel %vm333, %v330, %v332
        %339 = vst [vmem:[#allocation3 + $0x18] sm:$0xf] %v334
        %340 = vst [vmem:[#allocation3 + $0x20] sm:$0xf] %v335
        %341 = vst.msk [vmem:[#allocation3 + $0x28] sm:$0xf] %vm319, %v332
        %342 = vst [vmem:[#allocation1] ss:$2 sm:$0xff] %v304
        %s343 = scalar_lea.vmem [#allocation1], 16
        %344 = vst [vmem:[%s343] ss:$2 sm:$0xff] %v305
        %v345 = vld.sshfl [vmem:[#allocation1] sm:$0xff pattern:$0x75316420]
        %v346 = vld.sshfl [vmem:[#allocation1 + $0x8] sm:$0xff pattern:$0x75316420]
        %v347 = vld.sshfl [vmem:[#allocation1 + $0x10] sm:$0xff pattern:$0x75316420]
        %348 = vrot.lane.b32.xlu0 %v345, 126
        %v349 = vpop.permute.xlu0 %348
        %350 = vrot.lane.b32.xlu0 %v346, 126
        %v351 = vpop.permute.xlu0 %350
        %352 = vrot.lane.b32.xlu0 %v347, 126
        %v353 = vpop.permute.xlu0 %352
        %vm354 = vcmask 1031168
        %v355 = vsel %vm354, %v349, %v351
        %v356 = vsel %vm354, %v351, %v353
        %360 = vst [vmem:[#allocation3 + $0x30] sm:$0xf] %v355
        %361 = vst [vmem:[#allocation3 + $0x38] sm:$0xf] %v356
        %362 = vst.msk [vmem:[#allocation3 + $0x40] sm:$0xf] %vm319, %v353
        %363 = vst [vmem:[#allocation1] ss:$2 sm:$0xff] %v304
        %s364 = scalar_lea.vmem [#allocation1], 16
        %365 = vst [vmem:[%s364] ss:$2 sm:$0xff] %v305
        %v366 = vld.sshfl [vmem:[#allocation1] sm:$0xff pattern:$0x75316420]
        %v367 = vld.sshfl [vmem:[#allocation1 + $0x8] sm:$0xff pattern:$0x75316420]
        %v368 = vld.sshfl [vmem:[#allocation1 + $0x10] sm:$0xff pattern:$0x75316420]
        %369 = vrot.lane.b32.xlu0 %v366, 110
        %v370 = vpop.permute.xlu0 %369
        %371 = vrot.lane.b32.xlu0 %v367, 110
        %v372 = vpop.permute.xlu0 %371
        %373 = vrot.lane.b32.xlu0 %v368, 110
        %v374 = vpop.permute.xlu0 %373
        %vm375 = vcmask 900096
        %v376 = vsel %vm375, %v370, %v372
        %v377 = vsel %vm375, %v372, %v374
        %381 = vst [vmem:[#allocation3 + $0x48] sm:$0xf] %v376
        %382 = vst [vmem:[#allocation3 + $0x50] sm:$0xf] %v377
        %383 = vst.msk [vmem:[#allocation3 + $0x58] sm:$0xf] %vm319, %v374
        %384 = vst [vmem:[#allocation1] ss:$2 sm:$0xff] %v304
        %s385 = scalar_lea.vmem [#allocation1], 16
        %386 = vst [vmem:[%s385] ss:$2 sm:$0xff] %v305
        %v387 = vld.sshfl [vmem:[#allocation1] sm:$0xff pattern:$0x75316420]
        %v388 = vld.sshfl [vmem:[#allocation1 + $0x8] sm:$0xff pattern:$0x75316420]
        %v389 = vld.sshfl [vmem:[#allocation1 + $0x10] sm:$0xff pattern:$0x75316420]
        %390 = vrot.lane.b32.xlu0 %v387, 109
        %v391 = vpop.permute.xlu0 %390
        %392 = vrot.lane.b32.xlu0 %v388, 109
        %v393 = vpop.permute.xlu0 %392
        %394 = vrot.lane.b32.xlu0 %v389, 109
        %v395 = vpop.permute.xlu0 %394
        %vm396 = vcmask 891904
        %v397 = vsel %vm396, %v391, %v393
        %v398 = vsel %vm396, %v393, %v395
        %402 = vst [vmem:[#allocation3 + $0x60] sm:$0xf] %v397
        %403 = vst [vmem:[#allocation3 + $0x68] sm:$0xf] %v398
        %404 = vst.msk [vmem:[#allocation3 + $0x70] sm:$0xf] %vm319, %v395
        %405 = vst [vmem:[#allocation1] ss:$2 sm:$0xff] %v304
        %s406 = scalar_lea.vmem [#allocation1], 16
        %407 = vst [vmem:[%s406] ss:$2 sm:$0xff] %v305
        %v408 = vld.sshfl [vmem:[#allocation1] sm:$0xff pattern:$0x75316420]
        %v409 = vld.sshfl [vmem:[#allocation1 + $0x8] sm:$0xff pattern:$0x75316420]
        %v410 = vld.sshfl [vmem:[#allocation1 + $0x10] sm:$0xff pattern:$0x75316420]
        %411 = vrot.lane.b32.xlu0 %v408, 108
        %v412 = vpop.permute.xlu0 %411
        %413 = vrot.lane.b32.xlu0 %v409, 108
        %v414 = vpop.permute.xlu0 %413
        %415 = vrot.lane.b32.xlu0 %v410, 108
        %v416 = vpop.permute.xlu0 %415
        %vm417 = vcmask 883712
        %v418 = vsel %vm417, %v412, %v414
        %v419 = vsel %vm417, %v414, %v416
        %423 = vst [vmem:[#allocation3 + $0x78] sm:$0xf] %v418
        %424 = vst [vmem:[#allocation3 + $0x80] sm:$0xf] %v419
        %425 = vst.msk [vmem:[#allocation3 + $0x88] sm:$0xf] %vm319, %v416
        %426 = vst [vmem:[#allocation1] ss:$2 sm:$0xff] %v304
        %s427 = scalar_lea.vmem [#allocation1], 16
        %428 = vst [vmem:[%s427] ss:$2 sm:$0xff] %v305
        %v429 = vld.sshfl [vmem:[#allocation1] sm:$0xff pattern:$0x75316420]
        %v430 = vld.sshfl [vmem:[#allocation1 + $0x8] sm:$0xff pattern:$0x75316420]
        %v431 = vld.sshfl [vmem:[#allocation1 + $0x10] sm:$0xff pattern:$0x75316420]
        %432 = vrot.lane.b32.xlu0 %v429, 92
        %v433 = vpop.permute.xlu0 %432
        %434 = vrot.lane.b32.xlu0 %v430, 92
        %v435 = vpop.permute.xlu0 %434
        %436 = vrot.lane.b32.xlu0 %v431, 92
        %v437 = vpop.permute.xlu0 %436
        %vm438 = vcmask 752640
        %v439 = vsel %vm438, %v433, %v435
        %v440 = vsel %vm438, %v435, %v437
        %444 = vst [vmem:[#allocation3 + $0x90] sm:$0xf] %v439
        %445 = vst [vmem:[#allocation3 + $0x98] sm:$0xf] %v440
        %446 = vst.msk [vmem:[#allocation3 + $0xa0] sm:$0xf] %vm319, %v437
        %447 = vst [vmem:[#allocation1] ss:$2 sm:$0xff] %v304
        %s448 = scalar_lea.vmem [#allocation1], 16
        %449 = vst [vmem:[%s448] ss:$2 sm:$0xff] %v305
        %v450 = vld.sshfl [vmem:[#allocation1] sm:$0xff pattern:$0x75316420]
        %v451 = vld.sshfl [vmem:[#allocation1 + $0x8] sm:$0xff pattern:$0x75316420]
        %v452 = vld.sshfl [vmem:[#allocation1 + $0x10] sm:$0xff pattern:$0x75316420]
        %453 = vrot.lane.b32.xlu0 %v450, 91
        %v454 = vpop.permute.xlu0 %453
        %455 = vrot.lane.b32.xlu0 %v451, 91
        %v456 = vpop.permute.xlu0 %455
        %457 = vrot.lane.b32.xlu0 %v452, 91
        %v458 = vpop.permute.xlu0 %457
        %vm459 = vcmask 744448
        %v460 = vsel %vm459, %v454, %v456
        %v461 = vsel %vm459, %v456, %v458
        %465 = vst [vmem:[#allocation3 + $0xa8] sm:$0xf] %v460
        %466 = vst [vmem:[#allocation3 + $0xb0] sm:$0xf] %v461
        %467 = vst.msk [vmem:[#allocation3 + $0xb8] sm:$0xf] %vm319, %v458
        %468 = vst [vmem:[#allocation1] ss:$2 sm:$0xff] %v304
        %s469 = scalar_lea.vmem [#allocation1], 16
        %470 = vst [vmem:[%s469] ss:$2 sm:$0xff] %v305
        %v471 = vld.sshfl [vmem:[#allocation1] sm:$0xff pattern:$0x75316420]
        %v472 = vld.sshfl [vmem:[#allocation1 + $0x8] sm:$0xff pattern:$0x75316420]
        %v473 = vld.sshfl [vmem:[#allocation1 + $0x10] sm:$0xff pattern:$0x75316420]
        %474 = vrot.lane.b32.xlu0 %v471, 90
        %v475 = vpop.permute.xlu0 %474
        %476 = vrot.lane.b32.xlu0 %v472, 90
        %v477 = vpop.permute.xlu0 %476
        %478 = vrot.lane.b32.xlu0 %v473, 90
        %v479 = vpop.permute.xlu0 %478
        %vm480 = vcmask 736256
        %v481 = vsel %vm480, %v475, %v477
        %v482 = vsel %vm480, %v477, %v479
        %486 = vst [vmem:[#allocation3 + $0xc0] sm:$0xf] %v481
        %487 = vst [vmem:[#allocation3 + $0xc8] sm:$0xf] %v482
        %488 = vst.msk [vmem:[#allocation3 + $0xd0] sm:$0xf] %vm319, %v479
        %v489 = vld [vmem:[%s2] sm:$0xff]
        %v490 = vld [vmem:[#allocation3] sm:$0xff]
        %v491 = vld [vmem:[#allocation3 + $0x8] sm:$0xff]
        %v492 = vld [vmem:[#allocation3 + $0x10] sm:$0xff]
        %v493 = vld [vmem:[#allocation3 + $0x18] sm:$0xff]
        %v494 = vld [vmem:[#allocation3 + $0x20] sm:$0xff]
        %v495 = vld [vmem:[#allocation3 + $0x28] sm:$0xff]
        %v496 = vld [vmem:[#allocation3 + $0x30] sm:$0xff]
        %v497 = vld [vmem:[#allocation3 + $0x38] sm:$0xff]
        %v498 = vld [vmem:[#allocation3 + $0x40] sm:$0xff]
        %v499 = vld [vmem:[#allocation3 + $0x48] sm:$0xff]
        %v500 = vld [vmem:[#allocation3 + $0x50] sm:$0xff]
        %v501 = vld [vmem:[#allocation3 + $0x58] sm:$0xff]
        %v502 = vld [vmem:[#allocation3 + $0x60] sm:$0xff]
        %v503 = vld [vmem:[#allocation3 + $0x68] sm:$0xff]
        %v504 = vld [vmem:[#allocation3 + $0x70] sm:$0xff]
        %v505 = vld [vmem:[#allocation3 + $0x78] sm:$0xff]
        %v506 = vld [vmem:[#allocation3 + $0x80] sm:$0xff]
        %v507 = vld [vmem:[#allocation3 + $0x88] sm:$0xff]
        %v508 = vld [vmem:[#allocation3 + $0x90] sm:$0xff]
        %v509 = vld [vmem:[#allocation3 + $0x98] sm:$0xff]
        %v510 = vld [vmem:[#allocation3 + $0xa0] sm:$0xff]
        %v511 = vld [vmem:[#allocation3 + $0xa8] sm:$0xff]
        %v512 = vld [vmem:[#allocation3 + $0xb0] sm:$0xff]
        %v513 = vld [vmem:[#allocation3 + $0xb8] sm:$0xff]
        %v514 = vld [vmem:[#allocation3 + $0xc0] sm:$0xff]
        %v515 = vld [vmem:[#allocation3 + $0xc8] sm:$0xff]
        %v516 = vld [vmem:[#allocation3 + $0xd0] sm:$0xff]
        %vm517 = vcmask 588800
        %v519 = vsel %vm517, %v489, 0
        %521 = vmatpush.msra.mxu0 0.0
        %522 = vmatpush.msra.mxu0 0.0
        %523 = vmatpush.msra.mxu0 0.0
        %524 = vmatpush.msra.mxu0 0.0
        %525 = vmatpush.msra.mxu0 0.0
        %526 = vmatpush.msra.mxu0 0.0
        %527 = vmatpush.msra.mxu0 0.0
        %528 = vmatpush.msra.mxu0 %v514
        %529 = vmatpush.msra.mxu0 %v511
        %530 = vmatpush.msra.mxu0 %v508
        %531 = vmatpush.msra.mxu0 %v505
        %532 = vmatpush.msra.mxu0 %v502
        %533 = vmatpush.msra.mxu0 %v499
        %534 = vmatpush.msra.mxu0 %v496
        %535 = vmatpush.msra.mxu0 %v493
        %536 = vmatpush.msra.mxu0 %v490
        %537 = vmatmul.f32.gmra.mxu0 %v519
        %v538 = vpop.f32.mrf.mxu0
        %v539 = vadd.f32 0.0, %v538
        %540 = vdwg.mxu0
        %541 = vmatpush.msra.mxu0 0.0
        %542 = vmatpush.msra.mxu0 0.0
        %543 = vmatpush.msra.mxu0 0.0
        %544 = vmatpush.msra.mxu0 0.0
        %545 = vmatpush.msra.mxu0 0.0
        %546 = vmatpush.msra.mxu0 0.0
        %547 = vmatpush.msra.mxu0 0.0
        %548 = vmatpush.msra.mxu0 %v515
        %549 = vmatpush.msra.mxu0 %v512
        %550 = vmatpush.msra.mxu0 %v509
        %551 = vmatpush.msra.mxu0 %v506
        %552 = vmatpush.msra.mxu0 %v503
        %553 = vmatpush.msra.mxu0 %v500
        %554 = vmatpush.msra.mxu0 %v497
        %555 = vmatpush.msra.mxu0 %v494
        %556 = vmatpush.msra.mxu0 %v491
        %557 = vmatmul.f32.gmra.mxu0 %v519
        %v558 = vpop.f32.mrf.mxu0
        %v559 = vadd.f32 0.0, %v558
        %560 = vdwg.mxu0
        %561 = vmatpush.msra.mxu0 0.0
        %562 = vmatpush.msra.mxu0 0.0
        %563 = vmatpush.msra.mxu0 0.0
        %564 = vmatpush.msra.mxu0 0.0
        %565 = vmatpush.msra.mxu0 0.0
        %566 = vmatpush.msra.mxu0 0.0
        %567 = vmatpush.msra.mxu0 0.0
        %568 = vmatpush.msra.mxu0 %v516
        %569 = vmatpush.msra.mxu0 %v513
        %570 = vmatpush.msra.mxu0 %v510
        %571 = vmatpush.msra.mxu0 %v507
        %572 = vmatpush.msra.mxu0 %v504
        %573 = vmatpush.msra.mxu0 %v501
        %574 = vmatpush.msra.mxu0 %v498
        %575 = vmatpush.msra.mxu0 %v495
        %576 = vmatpush.msra.mxu0 %v492
        %577 = vmatmul.f32.gmra.mxu0 %v519
        %v578 = vpop.f32.mrf.mxu0
        %v579 = vadd.f32 0.0, %v578
        %580 = vdwg.mxu0
        %s581 = smul.u32 %s21, 2
        %s582 = smul.u32 %s581, 3
        %s583 = smul.addr %s582, 8
        %s584 = scalar_lea.vmem [#allocation2], %s583
        %585 = vst [vmem:[%s584] sm:$0xff] %v539
        %586 = vst [vmem:[%s584 + $0x8] sm:$0xff] %v559
        %vm587 = vcmask 244736
        %588 = vst.msk [vmem:[%s584 + $0x10] sm:$0xff] %vm587, %v579
        %v590 = vperm.slane %v303, 0
        %v591 = vperm.slane %v303, 1
        %v592 = vperm.slane %v303, 2
        %v596 = vmul.f32 %v539, %v590
        %v597 = vmul.f32 %v559, %v591
        %v598 = vmul.f32 %v579, %v592
        %v599 = vadd.f32 %v596, %v597
        %v600 = vsel %vm587, %v598, 0.0
        %v601 = vadd.f32 %v599, %v600
        %602 = vadd.xlane.f32.xlu0 %v601
        %v603 = vpop.xlane.xlu0 %602
        %v604 = vadd.f32 %v603, 0.0
        %v605 = vmul.f32 %v596, %v539
        %v606 = vmul.f32 %v597, %v559
        %v607 = vmul.f32 %v598, %v579
        %v608 = vadd.f32 %v605, %v606
        %v609 = vsel %vm587, %v607, 0.0
        %v610 = vadd.f32 %v608, %v609
        %611 = vadd.xlane.f32.xlu0 %v610
        %v612 = vpop.xlane.xlu0 %611
        %v613 = vadd.f32 %v612, 0.0
        %s614 = scalar_lea.vmem %s251, 12
        %v615 = vld [vmem:[%s614] sm:$0xff]
        %v616 = vld [vmem:[%s614 + $0x8] sm:$0xf]
        %619 = vst [vmem:[#allocation1] ss:$2 sm:$0xff] %v615
        %s620 = scalar_lea.vmem [#allocation1], 16
        %621 = vst [vmem:[%s620] ss:$2 sm:$0xff] %v616
        %v622 = vld.sshfl [vmem:[#allocation1] sm:$0xff pattern:$0x75316420]
        %v623 = vld.sshfl [vmem:[#allocation1 + $0x8] sm:$0xff pattern:$0x75316420]
        %v624 = vld.sshfl [vmem:[#allocation1 + $0x10] sm:$0xff pattern:$0x75316420]
        %628 = vst [vmem:[#allocation3] sm:$0xf] %v622
        %629 = vst [vmem:[#allocation3 + $0x8] sm:$0xf] %v623
        %630 = vst.msk [vmem:[#allocation3 + $0x10] sm:$0xf] %vm319, %v624
        %631 = vst [vmem:[#allocation1] ss:$2 sm:$0xff] %v615
        %s632 = scalar_lea.vmem [#allocation1], 16
        %633 = vst [vmem:[%s632] ss:$2 sm:$0xff] %v616
        %v634 = vld.sshfl [vmem:[#allocation1] sm:$0xff pattern:$0x75316420]
        %v635 = vld.sshfl [vmem:[#allocation1 + $0x8] sm:$0xff pattern:$0x75316420]
        %v636 = vld.sshfl [vmem:[#allocation1 + $0x10] sm:$0xff pattern:$0x75316420]
        %637 = vrot.lane.b32.xlu0 %v634, 127
        %v638 = vpop.permute.xlu0 %637
        %639 = vrot.lane.b32.xlu0 %v635, 127
        %v640 = vpop.permute.xlu0 %639
        %641 = vrot.lane.b32.xlu0 %v636, 127
        %v642 = vpop.permute.xlu0 %641
        %v643 = vsel %vm333, %v638, %v640
        %v644 = vsel %vm333, %v640, %v642
        %648 = vst [vmem:[#allocation3 + $0x18] sm:$0xf] %v643
        %649 = vst [vmem:[#allocation3 + $0x20] sm:$0xf] %v644
        %650 = vst.msk [vmem:[#allocation3 + $0x28] sm:$0xf] %vm319, %v642
        %651 = vst [vmem:[#allocation1] ss:$2 sm:$0xff] %v615
        %s652 = scalar_lea.vmem [#allocation1], 16
        %653 = vst [vmem:[%s652] ss:$2 sm:$0xff] %v616
        %v654 = vld.sshfl [vmem:[#allocation1] sm:$0xff pattern:$0x75316420]
        %v655 = vld.sshfl [vmem:[#allocation1 + $0x8] sm:$0xff pattern:$0x75316420]
        %v656 = vld.sshfl [vmem:[#allocation1 + $0x10] sm:$0xff pattern:$0x75316420]
        %657 = vrot.lane.b32.xlu0 %v654, 126
        %v658 = vpop.permute.xlu0 %657
        %659 = vrot.lane.b32.xlu0 %v655, 126
        %v660 = vpop.permute.xlu0 %659
        %661 = vrot.lane.b32.xlu0 %v656, 126
        %v662 = vpop.permute.xlu0 %661
        %v663 = vsel %vm354, %v658, %v660
        %v664 = vsel %vm354, %v660, %v662
        %668 = vst [vmem:[#allocation3 + $0x30] sm:$0xf] %v663
        %669 = vst [vmem:[#allocation3 + $0x38] sm:$0xf] %v664
        %670 = vst.msk [vmem:[#allocation3 + $0x40] sm:$0xf] %vm319, %v662
        %671 = vst [vmem:[#allocation1] ss:$2 sm:$0xff] %v615
        %s672 = scalar_lea.vmem [#allocation1], 16
        %673 = vst [vmem:[%s672] ss:$2 sm:$0xff] %v616
        %v674 = vld.sshfl [vmem:[#allocation1] sm:$0xff pattern:$0x75316420]
        %v675 = vld.sshfl [vmem:[#allocation1 + $0x8] sm:$0xff pattern:$0x75316420]
        %v676 = vld.sshfl [vmem:[#allocation1 + $0x10] sm:$0xff pattern:$0x75316420]
        %677 = vrot.lane.b32.xlu0 %v674, 110
        %v678 = vpop.permute.xlu0 %677
        %679 = vrot.lane.b32.xlu0 %v675, 110
        %v680 = vpop.permute.xlu0 %679
        %681 = vrot.lane.b32.xlu0 %v676, 110
        %v682 = vpop.permute.xlu0 %681
        %v683 = vsel %vm375, %v678, %v680
        %v684 = vsel %vm375, %v680, %v682
        %688 = vst [vmem:[#allocation3 + $0x48] sm:$0xf] %v683
        %689 = vst [vmem:[#allocation3 + $0x50] sm:$0xf] %v684
        %690 = vst.msk [vmem:[#allocation3 + $0x58] sm:$0xf] %vm319, %v682
        %691 = vst [vmem:[#allocation1] ss:$2 sm:$0xff] %v615
        %s692 = scalar_lea.vmem [#allocation1], 16
        %693 = vst [vmem:[%s692] ss:$2 sm:$0xff] %v616
        %v694 = vld.sshfl [vmem:[#allocation1] sm:$0xff pattern:$0x75316420]
        %v695 = vld.sshfl [vmem:[#allocation1 + $0x8] sm:$0xff pattern:$0x75316420]
        %v696 = vld.sshfl [vmem:[#allocation1 + $0x10] sm:$0xff pattern:$0x75316420]
        %697 = vrot.lane.b32.xlu0 %v694, 109
        %v698 = vpop.permute.xlu0 %697
        %699 = vrot.lane.b32.xlu0 %v695, 109
        %v700 = vpop.permute.xlu0 %699
        %701 = vrot.lane.b32.xlu0 %v696, 109
        %v702 = vpop.permute.xlu0 %701
        %v703 = vsel %vm396, %v698, %v700
        %v704 = vsel %vm396, %v700, %v702
        %708 = vst [vmem:[#allocation3 + $0x60] sm:$0xf] %v703
        %709 = vst [vmem:[#allocation3 + $0x68] sm:$0xf] %v704
        %710 = vst.msk [vmem:[#allocation3 + $0x70] sm:$0xf] %vm319, %v702
        %711 = vst [vmem:[#allocation1] ss:$2 sm:$0xff] %v615
        %s712 = scalar_lea.vmem [#allocation1], 16
        %713 = vst [vmem:[%s712] ss:$2 sm:$0xff] %v616
        %v714 = vld.sshfl [vmem:[#allocation1] sm:$0xff pattern:$0x75316420]
        %v715 = vld.sshfl [vmem:[#allocation1 + $0x8] sm:$0xff pattern:$0x75316420]
        %v716 = vld.sshfl [vmem:[#allocation1 + $0x10] sm:$0xff pattern:$0x75316420]
        %717 = vrot.lane.b32.xlu0 %v714, 108
        %v718 = vpop.permute.xlu0 %717
        %719 = vrot.lane.b32.xlu0 %v715, 108
        %v720 = vpop.permute.xlu0 %719
        %721 = vrot.lane.b32.xlu0 %v716, 108
        %v722 = vpop.permute.xlu0 %721
        %v723 = vsel %vm417, %v718, %v720
        %v724 = vsel %vm417, %v720, %v722
        %728 = vst [vmem:[#allocation3 + $0x78] sm:$0xf] %v723
        %729 = vst [vmem:[#allocation3 + $0x80] sm:$0xf] %v724
        %730 = vst.msk [vmem:[#allocation3 + $0x88] sm:$0xf] %vm319, %v722
        %731 = vst [vmem:[#allocation1] ss:$2 sm:$0xff] %v615
        %s732 = scalar_lea.vmem [#allocation1], 16
        %733 = vst [vmem:[%s732] ss:$2 sm:$0xff] %v616
        %v734 = vld.sshfl [vmem:[#allocation1] sm:$0xff pattern:$0x75316420]
        %v735 = vld.sshfl [vmem:[#allocation1 + $0x8] sm:$0xff pattern:$0x75316420]
        %v736 = vld.sshfl [vmem:[#allocation1 + $0x10] sm:$0xff pattern:$0x75316420]
        %737 = vrot.lane.b32.xlu0 %v734, 92
        %v738 = vpop.permute.xlu0 %737
        %739 = vrot.lane.b32.xlu0 %v735, 92
        %v740 = vpop.permute.xlu0 %739
        %741 = vrot.lane.b32.xlu0 %v736, 92
        %v742 = vpop.permute.xlu0 %741
        %v743 = vsel %vm438, %v738, %v740
        %v744 = vsel %vm438, %v740, %v742
        %748 = vst [vmem:[#allocation3 + $0x90] sm:$0xf] %v743
        %749 = vst [vmem:[#allocation3 + $0x98] sm:$0xf] %v744
        %750 = vst.msk [vmem:[#allocation3 + $0xa0] sm:$0xf] %vm319, %v742
        %751 = vst [vmem:[#allocation1] ss:$2 sm:$0xff] %v615
        %s752 = scalar_lea.vmem [#allocation1], 16
        %753 = vst [vmem:[%s752] ss:$2 sm:$0xff] %v616
        %v754 = vld.sshfl [vmem:[#allocation1] sm:$0xff pattern:$0x75316420]
        %v755 = vld.sshfl [vmem:[#allocation1 + $0x8] sm:$0xff pattern:$0x75316420]
        %v756 = vld.sshfl [vmem:[#allocation1 + $0x10] sm:$0xff pattern:$0x75316420]
        %757 = vrot.lane.b32.xlu0 %v754, 91
        %v758 = vpop.permute.xlu0 %757
        %759 = vrot.lane.b32.xlu0 %v755, 91
        %v760 = vpop.permute.xlu0 %759
        %761 = vrot.lane.b32.xlu0 %v756, 91
        %v762 = vpop.permute.xlu0 %761
        %v763 = vsel %vm459, %v758, %v760
        %v764 = vsel %vm459, %v760, %v762
        %768 = vst [vmem:[#allocation3 + $0xa8] sm:$0xf] %v763
        %769 = vst [vmem:[#allocation3 + $0xb0] sm:$0xf] %v764
        %770 = vst.msk [vmem:[#allocation3 + $0xb8] sm:$0xf] %vm319, %v762
        %771 = vst [vmem:[#allocation1] ss:$2 sm:$0xff] %v615
        %s772 = scalar_lea.vmem [#allocation1], 16
        %773 = vst [vmem:[%s772] ss:$2 sm:$0xff] %v616
        %v774 = vld.sshfl [vmem:[#allocation1] sm:$0xff pattern:$0x75316420]
        %v775 = vld.sshfl [vmem:[#allocation1 + $0x8] sm:$0xff pattern:$0x75316420]
        %v776 = vld.sshfl [vmem:[#allocation1 + $0x10] sm:$0xff pattern:$0x75316420]
        %777 = vrot.lane.b32.xlu0 %v774, 90
        %v778 = vpop.permute.xlu0 %777
        %779 = vrot.lane.b32.xlu0 %v775, 90
        %v780 = vpop.permute.xlu0 %779
        %781 = vrot.lane.b32.xlu0 %v776, 90
        %v782 = vpop.permute.xlu0 %781
        %v783 = vsel %vm480, %v778, %v780
        %v784 = vsel %vm480, %v780, %v782
        %788 = vst [vmem:[#allocation3 + $0xc0] sm:$0xf] %v783
        %789 = vst [vmem:[#allocation3 + $0xc8] sm:$0xf] %v784
        %790 = vst.msk [vmem:[#allocation3 + $0xd0] sm:$0xf] %vm319, %v782
        %v791 = vld [vmem:[%s2] sm:$0xff]
        %v792 = vld [vmem:[#allocation3] sm:$0xff]
        %v793 = vld [vmem:[#allocation3 + $0x8] sm:$0xff]
        %v794 = vld [vmem:[#allocation3 + $0x10] sm:$0xff]
        %v795 = vld [vmem:[#allocation3 + $0x18] sm:$0xff]
        %v796 = vld [vmem:[#allocation3 + $0x20] sm:$0xff]
        %v797 = vld [vmem:[#allocation3 + $0x28] sm:$0xff]
        %v798 = vld [vmem:[#allocation3 + $0x30] sm:$0xff]
        %v799 = vld [vmem:[#allocation3 + $0x38] sm:$0xff]
        %v800 = vld [vmem:[#allocation3 + $0x40] sm:$0xff]
        %v801 = vld [vmem:[#allocation3 + $0x48] sm:$0xff]
        %v802 = vld [vmem:[#allocation3 + $0x50] sm:$0xff]
        %v803 = vld [vmem:[#allocation3 + $0x58] sm:$0xff]
        %v804 = vld [vmem:[#allocation3 + $0x60] sm:$0xff]
        %v805 = vld [vmem:[#allocation3 + $0x68] sm:$0xff]
        %v806 = vld [vmem:[#allocation3 + $0x70] sm:$0xff]
        %v807 = vld [vmem:[#allocation3 + $0x78] sm:$0xff]
        %v808 = vld [vmem:[#allocation3 + $0x80] sm:$0xff]
        %v809 = vld [vmem:[#allocation3 + $0x88] sm:$0xff]
        %v810 = vld [vmem:[#allocation3 + $0x90] sm:$0xff]
        %v811 = vld [vmem:[#allocation3 + $0x98] sm:$0xff]
        %v812 = vld [vmem:[#allocation3 + $0xa0] sm:$0xff]
        %v813 = vld [vmem:[#allocation3 + $0xa8] sm:$0xff]
        %v814 = vld [vmem:[#allocation3 + $0xb0] sm:$0xff]
        %v815 = vld [vmem:[#allocation3 + $0xb8] sm:$0xff]
        %v816 = vld [vmem:[#allocation3 + $0xc0] sm:$0xff]
        %v817 = vld [vmem:[#allocation3 + $0xc8] sm:$0xff]
        %v818 = vld [vmem:[#allocation3 + $0xd0] sm:$0xff]
        %v820 = vsel %vm517, %v791, 0
        %822 = vmatpush.msra.mxu0 0.0
        %823 = vmatpush.msra.mxu0 0.0
        %824 = vmatpush.msra.mxu0 0.0
        %825 = vmatpush.msra.mxu0 0.0
        %826 = vmatpush.msra.mxu0 0.0
        %827 = vmatpush.msra.mxu0 0.0
        %828 = vmatpush.msra.mxu0 0.0
        %829 = vmatpush.msra.mxu0 %v816
        %830 = vmatpush.msra.mxu0 %v813
        %831 = vmatpush.msra.mxu0 %v810
        %832 = vmatpush.msra.mxu0 %v807
        %833 = vmatpush.msra.mxu0 %v804
        %834 = vmatpush.msra.mxu0 %v801
        %835 = vmatpush.msra.mxu0 %v798
        %836 = vmatpush.msra.mxu0 %v795
        %837 = vmatpush.msra.mxu0 %v792
        %838 = vmatmul.f32.gmra.mxu0 %v820
        %v839 = vpop.f32.mrf.mxu0
        %v840 = vadd.f32 0.0, %v839
        %841 = vdwg.mxu0
        %842 = vmatpush.msra.mxu0 0.0
        %843 = vmatpush.msra.mxu0 0.0
        %844 = vmatpush.msra.mxu0 0.0
        %845 = vmatpush.msra.mxu0 0.0
        %846 = vmatpush.msra.mxu0 0.0
        %847 = vmatpush.msra.mxu0 0.0
        %848 = vmatpush.msra.mxu0 0.0
        %849 = vmatpush.msra.mxu0 %v817
        %850 = vmatpush.msra.mxu0 %v814
        %851 = vmatpush.msra.mxu0 %v811
        %852 = vmatpush.msra.mxu0 %v808
        %853 = vmatpush.msra.mxu0 %v805
        %854 = vmatpush.msra.mxu0 %v802
        %855 = vmatpush.msra.mxu0 %v799
        %856 = vmatpush.msra.mxu0 %v796
        %857 = vmatpush.msra.mxu0 %v793
        %858 = vmatmul.f32.gmra.mxu0 %v820
        %v859 = vpop.f32.mrf.mxu0
        %v860 = vadd.f32 0.0, %v859
        %861 = vdwg.mxu0
        %862 = vmatpush.msra.mxu0 0.0
        %863 = vmatpush.msra.mxu0 0.0
        %864 = vmatpush.msra.mxu0 0.0
        %865 = vmatpush.msra.mxu0 0.0
        %866 = vmatpush.msra.mxu0 0.0
        %867 = vmatpush.msra.mxu0 0.0
        %868 = vmatpush.msra.mxu0 0.0
        %869 = vmatpush.msra.mxu0 %v818
        %870 = vmatpush.msra.mxu0 %v815
        %871 = vmatpush.msra.mxu0 %v812
        %872 = vmatpush.msra.mxu0 %v809
        %873 = vmatpush.msra.mxu0 %v806
        %874 = vmatpush.msra.mxu0 %v803
        %875 = vmatpush.msra.mxu0 %v800
        %876 = vmatpush.msra.mxu0 %v797
        %877 = vmatpush.msra.mxu0 %v794
        %878 = vmatmul.f32.gmra.mxu0 %v820
        %v879 = vpop.f32.mrf.mxu0
        %v880 = vadd.f32 0.0, %v879
        %881 = vdwg.mxu0
        %s882 = sadd.s32 %s581, 1
        %s883 = smul.u32 %s882, 3
        %s884 = smul.addr %s883, 8
        %s885 = scalar_lea.vmem [#allocation2], %s884
        %886 = vst [vmem:[%s885] sm:$0xff] %v840
        %887 = vst [vmem:[%s885 + $0x8] sm:$0xff] %v860
        %888 = vst.msk [vmem:[%s885 + $0x10] sm:$0xff] %vm587, %v880
        %v889 = vmul.f32 %v840, %v590
        %v890 = vmul.f32 %v860, %v591
        %v891 = vmul.f32 %v880, %v592
        %v892 = vadd.f32 %v889, %v890
        %v893 = vsel %vm587, %v891, 0.0
        %v894 = vadd.f32 %v892, %v893
        %895 = vadd.xlane.f32.xlu0 %v894
        %v896 = vpop.xlane.xlu0 %895
        %v897 = vadd.f32 %v604, %v896
        %v898 = vmul.f32 %v889, %v840
        %v899 = vmul.f32 %v890, %v860
        %v900 = vmul.f32 %v891, %v880
        %v901 = vadd.f32 %v898, %v899
        %v902 = vsel %vm587, %v900, 0.0
        %v903 = vadd.f32 %v901, %v902
        %904 = vadd.xlane.f32.xlu0 %v903
        %v905 = vpop.xlane.xlu0 %904
        %v906 = vadd.f32 %v613, %v905
        %v907 = vld [vmem:[#allocation4] sm:$0xff]
        %v908 = vadd.f32 %v907, %v897
        %vm909 = vcmask 7168
        %910 = vst.msk [vmem:[#allocation4] sm:$0xff] %vm909, %v908
        %v911 = vld [vmem:[#allocation5] sm:$0xff]
        %v912 = vadd.f32 %v911, %v906
        %913 = vst.msk [vmem:[#allocation5] sm:$0xff] %vm909, %v912
      $region44: #{basic_conv2d.1} parent=39 // pred_fallthru
        _
      %p914 = scmp.eq.s32.totalorder %s20, 1
      // Predicated region
      $region49: #{basic_conv2d.1} parent=39 // pred_check
        %p915 = pneg %p914
      $region50: #{basic_conv2d.1} parent=39 // pred_check_branch
        %917 = sbr.rel (%p915) target = $region52
      $region51: #{basic_conv2d.1} parent=39 // pred_region
        %p918 = scmp.eq.s32.totalorder %s21, 0
        // Predicated region
        $region53: #{basic_conv2d.1} parent=51 // pred_check
          %p919 = pneg %p918
        $region54: #{basic_conv2d.1} parent=51 // pred_check_branch
          %921 = sbr.rel (%p919) target = $region56
        $region55: #{basic_conv2d.1} parent=51 // pred_region
          %v922 = vld [vmem:[#allocation4] sm:$0xff]
          %v923 = vmul.f32 %v922, 0.001953125
          %v924 = vld [vmem:[#allocation5] sm:$0xff]
          %v925 = vmul.f32 %v924, 0.001953125
          %v926 = vmul.f32 %v923, %v923
          %v927 = vsub.f32 %v925, %v926
          %v928 = vld [vmem:[%s3] sm:$0xff]
          %v929 = vadd.f32 %v927, 1e-05
          %v930 = vrsqrt.pop %v929
          %v931 = vmul.f32 %v930, %v929
          %v932 = vmul.f32 %v931, %v930
          %v933 = vmul.f32 0.5, %v932
          %v934 = vsub.f32 1.5, %v933
          %v935 = vmul.f32 %v930, %v934
          %vm936 = vweird.f32 %v929
          %vm937 = vweird.f32 %v930
          %vm938 = vmor %vm936, %vm937
          %v939 = vsel %vm938, %v930, %v935
          %v940 = vmul.f32 %v928, %v939
          %vm941 = vcmask 7168
          %942 = vst.msk [vmem:[#allocation6] sm:$0xff] %vm941, %v940
          %v943 = vld [vmem:[%s4] sm:$0xff]
          %v944 = vmul.f32 %v923, %v940
          %v945 = vsub.f32 %v943, %v944
          %946 = vst.msk [vmem:[#allocation7] sm:$0xff] %vm941, %v945
        $region56: #{basic_conv2d.1} parent=51 // pred_fallthru
          _
        %v947 = vld [vmem:[#allocation6] sm:$0xff]
        %949 = vset.pattern.permute.xlu0 0
        %950 = vperm.xlu0 %949, %v947
        %v951 = vpop.permute.xlu0 %950
        %v953 = vld [vmem:[#allocation7] sm:$0xff]
        %955 = vset.pattern.permute.xlu0 0
        %956 = vperm.xlu0 %955, %v953
        %v957 = vpop.permute.xlu0 %956
        %s959 = smul.u32 %s21, 2
        %s960 = smul.u32 %s959, 3
        %s961 = smul.addr %s960, 8
        %s962 = scalar_lea.vmem [#allocation2], %s961
        %v963 = vld [vmem:[%s962] sm:$0xff]
        %v964 = vld [vmem:[%s962 + $0x8] sm:$0xff]
        %v965 = vld [vmem:[%s962 + $0x10] sm:$0xff]
        %v966 = vmul.f32 %v963, %v951
        %v967 = vmul.f32 %v964, %v951
        %v968 = vmul.f32 %v965, %v951
        %v969 = vadd.f32 %v966, %v957
        %v970 = vadd.f32 %v967, %v957
        %v971 = vadd.f32 %v968, %v957
        %972 = vst [vmem:[%s261] sm:$0xff] %v969
        %973 = vst [vmem:[%s261 + $0x8] sm:$0xff] %v970
        %vm974 = vcmask 244736
        %975 = vst.msk [vmem:[%s261 + $0x10] sm:$0xff] %vm974, %v971
        %s976 = sadd.s32 %s959, 1
        %s977 = smul.u32 %s976, 3
        %s978 = smul.addr %s977, 8
        %s979 = scalar_lea.vmem [#allocation2], %s978
        %v980 = vld [vmem:[%s979] sm:$0xff]
        %v981 = vld [vmem:[%s979 + $0x8] sm:$0xff]
        %v982 = vld [vmem:[%s979 + $0x10] sm:$0xff]
        %v983 = vmul.f32 %v980, %v951
        %v984 = vmul.f32 %v981, %v951
        %v985 = vmul.f32 %v982, %v951
        %v986 = vadd.f32 %v983, %v957
        %v987 = vadd.f32 %v984, %v957
        %v988 = vadd.f32 %v985, %v957
        %s989 = scalar_lea.vmem %s261, 24
        %990 = vst [vmem:[%s989] sm:$0xff] %v986
        %991 = vst [vmem:[%s989 + $0x8] sm:$0xff] %v987
        %992 = vst.msk [vmem:[%s989 + $0x10] sm:$0xff] %vm974, %v988
      $region52: #{basic_conv2d.1} parent=39 // pred_fallthru
        _
      %s993 = smul.u32 %s20, %s21
      %s994 = smul.u32 2, %s993
      %p995 = scmp.lt.s32.totalorder %s994, 1
      %s996 = scalar_select %p995, %s994, 1
      %s997 = smul.addr %s996, 3
      %s998 = smul.addr %s997, 8
      %s999 = scalar_lea.vmem %s5, %s998
      // Predicated region
      $region57: #{basic_conv2d.1} parent=39 // pred_check
        %p1000 = pneg %p162
      $region58: #{basic_conv2d.1} parent=39 // pred_check_branch
        %1002 = sbr.rel (%p1000) target = $region60
      $region59: #{basic_conv2d.1} parent=39 // pred_region
        %s1003 = smul.u32 %s20, %s21
        %s1004 = smul.u32 2, %s1003
      $region60: #{basic_conv2d.1} parent=39 // pred_fallthru
        _
    $region40: #{basic_conv2d.1} parent=5 // pred_fallthru
      _
    %p1005 = scmp.le.s32.totalorder 2, %s11
    // Predicated region
    $region61: #{basic_conv2d.1} parent=5 // pred_check
      %p1006 = pneg %p1005
    $region62: #{basic_conv2d.1} parent=5 // pred_check_branch
      %1008 = sbr.rel (%p1006) target = $region64
    $region63: #{basic_conv2d.1} parent=5 // pred_region
      %s1009 = ssub.s32 %s11, 2
      // Predicated region
      $region65: #{basic_conv2d.1} parent=63 // pred_check
        %p1010 = pneg %p168
      $region66: #{basic_conv2d.1} parent=63 // pred_check_branch
        %1012 = sbr.rel (%p1010) target = $region68
      $region67: #{basic_conv2d.1} parent=63 // pred_region
        %s1013 = smul.u32 %s22, %s23
        %s1014 = smul.u32 2, %s1013
        %p1015 = scmp.lt.s32.totalorder %s1014, 1
        %s1016 = scalar_select %p1015, %s1014, 1
        %s1017 = smul.addr %s1016, 3
        %s1018 = smul.addr %s1017, 8
        %s1019 = scalar_lea.vmem %s5, %s1018
      $region68: #{basic_conv2d.1} parent=63 // pred_fallthru
        _
    $region64: #{basic_conv2d.1} parent=5 // pred_fallthru
      _
  $region6: #{basic_conv2d.1} parent=0 // loop_footer
    %s15 = sadd.s32 1, %s11
  $region7: #{basic_conv2d.1} parent=0 // loop_footer_branch
    %10 = sbr.rel target = $region3
  $region8: #{basic_conv2d.1} parent=0 // loop_exit
    _

</llo_original>
